<compile_context>
chip_gen: v6e
topology: v6e:2x2x1
jax: 0.10.0
libtpu: 0.0.40
codegen_flags: <defaults>
</compile_context>

<pallas_src>
import jax
import jax.numpy as jnp
from jax.experimental import pallas as pl
from jax.experimental.pallas import tpu as pltpu

# ---- model hyper-parameters (small, consistent with the module defaults) ----
DIM = 32          # embedding dim C
NUM_HEADS = 8
MLP_DIM = 64
DEPTH = 2
HEAD_DIM = DIM // NUM_HEADS          # 4
HC = NUM_HEADS * DIM                 # 256 = concat-of-heads width
SCALE = HEAD_DIM ** (-0.5)           # qk_scale = head_dim ** -0.5
EPS = 1e-6
INV_SQRT2 = 0.7071067811865476

FUSED_ORDER = [
    "seg", "expand",
    "ln1_g", "ln1_b", "wq_bd", "wk_bd", "wv_bd", "projT", "proj_b",
    "ln2_g", "ln2_b", "fc1T", "fc1_b", "fc2T", "fc2_b",
    "enc_g", "enc_b",
]


def _layernorm(x, g, b):
    mean = jnp.mean(x, axis=-1, keepdims=True)
    var = jnp.mean((x - mean) ** 2, axis=-1, keepdims=True)
    return (x - mean) * jax.lax.rsqrt(var + EPS) * g + b


def _gelu(x):
    # exact (erf-based) GELU, matching torch.nn.GELU default
    return 0.5 * x * (1.0 + jax.lax.erf(x * INV_SQRT2))


def encoder_kernel(x_ref, seg_ref, exp_ref,
                   ln1_g_ref, ln1_b_ref, wq_ref, wk_ref, wv_ref,
                   projT_ref, proj_b_ref, ln2_g_ref, ln2_b_ref,
                   fc1T_ref, fc1_b_ref, fc2T_ref, fc2_b_ref,
                   enc_g_ref, enc_b_ref,
                   out_ref):
    TB, N, C = x_ref.shape                       # batch tile, tokens, embed dim
    x3 = x_ref[...]                              # (TB, N, C)
    seg = seg_ref[...]                           # (H*C, H)  one-hot head segments
    exp = exp_ref[...]                           # (H, H*C)  = seg.T

    for l in range(DEPTH):                       # static unroll over depth
        # ---- hoist per-layer weight loads (one Ref read each) ----
        ln1_g = ln1_g_ref[l]; ln1_b = ln1_b_ref[l]          # (1, C)
        wq = wq_ref[l]; wk = wk_ref[l]; wv = wv_ref[l]      # (C, H*C) block-diag
        projT = projT_ref[l]; proj_b = proj_b_ref[l]        # (H*C, C), (1, C)
        ln2_g = ln2_g_ref[l]; ln2_b = ln2_b_ref[l]          # (1, C)
        fc1T = fc1T_ref[l]; fc1_b = fc1_b_ref[l]            # (C, M), (1, M)
        fc2T = fc2T_ref[l]; fc2_b = fc2_b_ref[l]            # (M, C), (1, C)

        # ---------- attention sub-block ----------
        x2 = x3.reshape(TB * N, C)
        xn2 = _layernorm(x2, ln1_g, ln1_b)                  # (TB*N, C)
        xn3 = xn2.reshape(TB, N, C)
        xn_cls = xn3[:, 0, :]                               # (TB, C) CLS rows

        # fused all-head projections (single MXU matmuls)
        k2 = jnp.dot(xn2, wk, preferred_element_type=jnp.float32)      # (TB*N, H*C)
        v2 = jnp.dot(xn2, wv, preferred_element_type=jnp.float32)      # (TB*N, H*C)
        q_cls = jnp.dot(xn_cls, wq, preferred_element_type=jnp.float32)  # (TB, H*C)

        # per-head scores: elementwise q*k then one-hot segment reduction (K=256)
        k3 = k2.reshape(TB, N, HC)
        kq3 = k3 * q_cls[:, None, :]                        # (TB, N, H*C)
        s2 = jnp.dot(kq3.reshape(TB * N, HC), seg,
                     preferred_element_type=jnp.float32) * SCALE        # (TB*N, H)
        s3 = s2.reshape(TB, N, NUM_HEADS)

        # softmax over the token axis (per sample, per head)
        s3 = s3 - jnp.max(s3, axis=1, keepdims=True)
        p3 = jnp.exp(s3)
        p3 = p3 / jnp.sum(p3, axis=1, keepdims=True)        # (TB, N, H)

        # expand probs over each head's 32-lane segment, weight V, reduce tokens
        pe2 = jnp.dot(p3.reshape(TB * N, NUM_HEADS), exp,
                      preferred_element_type=jnp.float32)   # (TB*N, H*C)
        o2 = jnp.sum((pe2 * v2).reshape(TB, N, HC), axis=1)  # (TB, H*C) head-major

        # single fused output projection (K = H*C = 256)
        attn = jnp.dot(o2, projT, preferred_element_type=jnp.float32) + proj_b  # (TB, C)
        x3 = x3 + attn[:, None, :]                          # broadcast residual

        # ---------- MLP sub-block ----------
        x2 = x3.reshape(TB * N, C)
        xn2 = _layernorm(x2, ln2_g, ln2_b)
        h1 = jnp.dot(xn2, fc1T, preferred_element_type=jnp.float32) + fc1_b
        h1 = _gelu(h1)
        y2 = jnp.dot(h1, fc2T, preferred_element_type=jnp.float32) + fc2_b
        x3 = (x2 + y2).reshape(TB, N, C)

    # final encoder_norm on the CLS rows only; one lane-dense (TB, C) store
    x_cls = x3[:, 0, :]                                     # (TB, C)
    out_ref[...] = _layernorm(x_cls, enc_g_ref[...], enc_b_ref[...])


def _pick_batch_tile(B):
    for cand in (16, 8, 4, 2, 1):
        if cand <= B and B % cand == 0:
            return cand
    return 1


def transformer_encoder(x, fused):
    B, N, C = x.shape
    TB = _pick_batch_tile(B)
    grid = (B // TB,)
    weights = [fused[k] for k in FUSED_ORDER]

    in_specs = [pl.BlockSpec((TB, N, C), lambda b: (b, 0, 0))]
    in_specs += [pl.BlockSpec(w.shape, lambda b, nd=w.ndim: (0,) * nd)
                 for w in weights]

    out = pl.pallas_call(
        encoder_kernel,
        grid=grid,
        in_specs=in_specs,
        out_specs=pl.BlockSpec((TB, C), lambda b: (b, 0)),
        out_shape=jax.ShapeDtypeStruct((B, C), x.dtype),
        compiler_params=pltpu.CompilerParams(dimension_semantics=("parallel",)),
    )(x, *weights)
    return out                                              # (B, C)


# ------------------------- deterministic parameter init -------------------------
def init_params(key):
    L, C, H, hd, M = DEPTH, DIM, NUM_HEADS, HEAD_DIM, MLP_DIM
    ks = jax.random.split(key, 10)

    def uni(k, shape, fan_in):
        bound = 1.0 / (fan_in ** 0.5)
        return jax.random.uniform(k, shape, jnp.float32, -bound, bound)

    def xavier(k, shape, fan_in, fan_out):
        bound = (6.0 / (fan_in + fan_out)) ** 0.5
        return jax.random.uniform(k, shape, jnp.float32, -bound, bound)

    return {
        "ln1_g": jnp.ones((L, 1, C), jnp.float32),
        "ln1_b": jnp.zeros((L, 1, C), jnp.float32),
        "wqT": uni(ks[0], (L, hd, C), hd),                     # wq: Linear(hd -> C), no bias
        "wkT": uni(ks[1], (L, hd, C), hd),
        "wvT": uni(ks[2], (L, hd, C), hd),
        "projT": uni(ks[3], (L, H * C, C), H * C),             # proj: Linear(H*C -> C)
        "proj_b": uni(ks[4], (L, 1, C), H * C),
        "ln2_g": jnp.ones((L, 1, C), jnp.float32),
        "ln2_b": jnp.zeros((L, 1, C), jnp.float32),
        "fc1T": xavier(ks[5], (L, C, M), C, M),                # fc1: Linear(C -> M)
        "fc1_b": 1e-6 * jax.random.normal(ks[6], (L, 1, M), jnp.float32),
        "fc2T": xavier(ks[7], (L, M, C), M, C),                # fc2: Linear(M -> C)
        "fc2_b": 1e-6 * jax.random.normal(ks[8], (L, 1, C), jnp.float32),
        "enc_g": jnp.ones((1, C), jnp.float32),
        "enc_b": jnp.zeros((1, C), jnp.float32),
    }


def build_fused(p):
    """Host-side weight restructuring: block-diagonal QKV + one-hot head-segment maps."""
    L, C, H = DEPTH, DIM, NUM_HEADS
    eye_h = jnp.eye(H, dtype=jnp.float32)

    def block_diag(wT):      # (L, hd, C) -> (L, C, H*C); same (hd,C) block per head
        return jnp.stack([jnp.kron(eye_h, wT[l]) for l in range(L)])

    seg = jnp.kron(eye_h, jnp.ones((C, 1), jnp.float32))     # (H*C, H)
    return {
        "seg": seg,
        "expand": seg.T,                                     # (H, H*C)
        "ln1_g": p["ln1_g"], "ln1_b": p["ln1_b"],
        "wq_bd": block_diag(p["wqT"]),
        "wk_bd": block_diag(p["wkT"]),
        "wv_bd": block_diag(p["wvT"]),
        "projT": p["projT"], "proj_b": p["proj_b"],
        "ln2_g": p["ln2_g"], "ln2_b": p["ln2_b"],
        "fc1T": p["fc1T"], "fc1_b": p["fc1_b"],
        "fc2T": p["fc2T"], "fc2_b": p["fc2_b"],
        "enc_g": p["enc_g"], "enc_b": p["enc_b"],
    }


# ------------------------- pure-JAX reference (for checking) -------------------------
def reference(x, p):
    def ln(x, g, b):
        mean = x.mean(-1, keepdims=True)
        var = ((x - mean) ** 2).mean(-1, keepdims=True)
        return (x - mean) / jnp.sqrt(var + EPS) * g + b

    B, N, C = x.shape
    H, hd = NUM_HEADS, HEAD_DIM
    for l in range(DEPTH):
        res = x
        xn = ln(x, p["ln1_g"][l], p["ln1_b"][l])
        q = (xn[:, 0:1].reshape(B, 1, H, hd) @ p["wqT"][l]).transpose(0, 2, 1, 3)  # (B,H,1,C)
        k = (xn.reshape(B, N, H, hd) @ p["wkT"][l]).transpose(0, 2, 1, 3)          # (B,H,N,C)
        v = (xn.reshape(B, N, H, hd) @ p["wvT"][l]).transpose(0, 2, 1, 3)          # (B,H,N,C)
        attn = jnp.einsum("bhid,bhjd->bhij", q, k) * SCALE
        attn = jax.nn.softmax(attn, axis=-1)
        o = jnp.einsum("bhij,bhjd->bhid", attn, v).transpose(0, 2, 1, 3)           # (B,1,H,C)
        o = o.reshape(B, 1, H * C) @ p["projT"][l] + p["proj_b"][l]                # (B,1,C)
        x = res + o
        res = x
        xn = ln(x, p["ln2_g"][l], p["ln2_b"][l])
        h1 = jax.nn.gelu(xn @ p["fc1T"][l] + p["fc1_b"][l], approximate=False)
        x = res + (h1 @ p["fc2T"][l] + p["fc2_b"][l])
    return ln(x, p["enc_g"], p["enc_b"])[:, 0]


if __name__ == "__main__":
    key = jax.random.PRNGKey(0)
    k_x, k_p = jax.random.split(key)

    B, N = 2, 8
    x = jax.random.normal(k_x, (B, N, DIM), jnp.float32)
    params = init_params(k_p)
    fused = build_fused(params)

    out = transformer_encoder(x, fused)
    out = jax.block_until_ready(out)

    ref = reference(x, params)
    assert out.shape == (B, DIM), out.shape
    assert jnp.allclose(out, ref, atol=1e-3, rtol=1e-3), (
        float(jnp.max(jnp.abs(out - ref))))

    print("KERNEL_OK")
</pallas_src>

<mosaic_0001>
module attributes {stable_mosaic.version = 11 : i64} {
  func.func @encoder_kernel(%arg0: i32, %arg1: memref<2x8x32xf32, #tpu.memory_space<vmem>>, %arg2: memref<256x8xf32, #tpu.memory_space<vmem>>, %arg3: memref<8x256xf32, #tpu.memory_space<vmem>>, %arg4: memref<2x1x32xf32, #tpu.memory_space<vmem>>, %arg5: memref<2x1x32xf32, #tpu.memory_space<vmem>>, %arg6: memref<2x32x256xf32, #tpu.memory_space<vmem>>, %arg7: memref<2x32x256xf32, #tpu.memory_space<vmem>>, %arg8: memref<2x32x256xf32, #tpu.memory_space<vmem>>, %arg9: memref<2x256x32xf32, #tpu.memory_space<vmem>>, %arg10: memref<2x1x32xf32, #tpu.memory_space<vmem>>, %arg11: memref<2x1x32xf32, #tpu.memory_space<vmem>>, %arg12: memref<2x1x32xf32, #tpu.memory_space<vmem>>, %arg13: memref<2x32x64xf32, #tpu.memory_space<vmem>>, %arg14: memref<2x1x64xf32, #tpu.memory_space<vmem>>, %arg15: memref<2x64x32xf32, #tpu.memory_space<vmem>>, %arg16: memref<2x1x32xf32, #tpu.memory_space<vmem>>, %arg17: memref<1x32xf32, #tpu.memory_space<vmem>>, %arg18: memref<1x32xf32, #tpu.memory_space<vmem>>, %arg19: memref<2x32xf32, #tpu.memory_space<vmem>>) attributes {dimension_semantics = [#tpu.dimension_semantics<parallel>], iteration_bounds = array<i64: 1>, scalar_prefetch = 0 : i64, scratch_operands = 0 : i64, tpu.core_type = #tpu.core_type<tc>, window_params = [{transform_indices = @transform_0, window_bounds = array<i64: 2, 8, 32>}, {pipeline_mode = #tpu.pipeline_mode<synchronous>, transform_indices = @transform_1, window_bounds = array<i64: 256, 8>}, {pipeline_mode = #tpu.pipeline_mode<synchronous>, transform_indices = @transform_2, window_bounds = array<i64: 8, 256>}, {pipeline_mode = #tpu.pipeline_mode<synchronous>, transform_indices = @transform_3, window_bounds = array<i64: 2, 1, 32>}, {pipeline_mode = #tpu.pipeline_mode<synchronous>, transform_indices = @transform_4, window_bounds = array<i64: 2, 1, 32>}, {pipeline_mode = #tpu.pipeline_mode<synchronous>, transform_indices = @transform_5, window_bounds = array<i64: 2, 32, 256>}, {pipeline_mode = #tpu.pipeline_mode<synchronous>, transform_indices = @transform_6, window_bounds = array<i64: 2, 32, 256>}, {pipeline_mode = #tpu.pipeline_mode<synchronous>, transform_indices = @transform_7, window_bounds = array<i64: 2, 32, 256>}, {pipeline_mode = #tpu.pipeline_mode<synchronous>, transform_indices = @transform_8, window_bounds = array<i64: 2, 256, 32>}, {pipeline_mode = #tpu.pipeline_mode<synchronous>, transform_indices = @transform_9, window_bounds = array<i64: 2, 1, 32>}, {pipeline_mode = #tpu.pipeline_mode<synchronous>, transform_indices = @transform_10, window_bounds = array<i64: 2, 1, 32>}, {pipeline_mode = #tpu.pipeline_mode<synchronous>, transform_indices = @transform_11, window_bounds = array<i64: 2, 1, 32>}, {pipeline_mode = #tpu.pipeline_mode<synchronous>, transform_indices = @transform_12, window_bounds = array<i64: 2, 32, 64>}, {pipeline_mode = #tpu.pipeline_mode<synchronous>, transform_indices = @transform_13, window_bounds = array<i64: 2, 1, 64>}, {pipeline_mode = #tpu.pipeline_mode<synchronous>, transform_indices = @transform_14, window_bounds = array<i64: 2, 64, 32>}, {pipeline_mode = #tpu.pipeline_mode<synchronous>, transform_indices = @transform_15, window_bounds = array<i64: 2, 1, 32>}, {pipeline_mode = #tpu.pipeline_mode<synchronous>, transform_indices = @transform_16, window_bounds = array<i64: 1, 32>}, {pipeline_mode = #tpu.pipeline_mode<synchronous>, transform_indices = @transform_17, window_bounds = array<i64: 1, 32>}, {transform_indices = @transform_18, window_bounds = array<i64: 2, 32>}]} {
    %c0 = arith.constant 0 : index
    %c0_0 = arith.constant 0 : index
    %c0_1 = arith.constant 0 : index
    %0 = vector.load %arg1[%c0, %c0_0, %c0_1] : memref<2x8x32xf32, #tpu.memory_space<vmem>>, vector<2x8x32xf32>
    %c0_2 = arith.constant 0 : index
    %c0_3 = arith.constant 0 : index
    %1 = vector.load %arg2[%c0_2, %c0_3] : memref<256x8xf32, #tpu.memory_space<vmem>>, vector<256x8xf32>
    %c0_4 = arith.constant 0 : index
    %c0_5 = arith.constant 0 : index
    %2 = vector.load %arg3[%c0_4, %c0_5] : memref<8x256xf32, #tpu.memory_space<vmem>>, vector<8x256xf32>
    %c0_6 = arith.constant 0 : index
    %c0_7 = arith.constant 0 : index
    %c0_8 = arith.constant 0 : index
    %3 = vector.load %arg4[%c0_6, %c0_7, %c0_8] : memref<2x1x32xf32, #tpu.memory_space<vmem>>, vector<1x1x32xf32>
    %4 = vector.shape_cast %3 : vector<1x1x32xf32> to vector<1x32xf32>
    %c0_9 = arith.constant 0 : index
    %c0_10 = arith.constant 0 : index
    %c0_11 = arith.constant 0 : index
    %5 = vector.load %arg5[%c0_9, %c0_10, %c0_11] : memref<2x1x32xf32, #tpu.memory_space<vmem>>, vector<1x1x32xf32>
    %6 = vector.shape_cast %5 : vector<1x1x32xf32> to vector<1x32xf32>
    %c0_12 = arith.constant 0 : index
    %c0_13 = arith.constant 0 : index
    %c0_14 = arith.constant 0 : index
    %7 = vector.load %arg6[%c0_12, %c0_13, %c0_14] : memref<2x32x256xf32, #tpu.memory_space<vmem>>, vector<1x32x256xf32>
    %8 = vector.shape_cast %7 : vector<1x32x256xf32> to vector<32x256xf32>
    %c0_15 = arith.constant 0 : index
    %c0_16 = arith.constant 0 : index
    %c0_17 = arith.constant 0 : index
    %9 = vector.load %arg7[%c0_15, %c0_16, %c0_17] : memref<2x32x256xf32, #tpu.memory_space<vmem>>, vector<1x32x256xf32>
    %10 = vector.shape_cast %9 : vector<1x32x256xf32> to vector<32x256xf32>
    %c0_18 = arith.constant 0 : index
    %c0_19 = arith.constant 0 : index
    %c0_20 = arith.constant 0 : index
    %11 = vector.load %arg8[%c0_18, %c0_19, %c0_20] : memref<2x32x256xf32, #tpu.memory_space<vmem>>, vector<1x32x256xf32>
    %12 = vector.shape_cast %11 : vector<1x32x256xf32> to vector<32x256xf32>
    %c0_21 = arith.constant 0 : index
    %c0_22 = arith.constant 0 : index
    %c0_23 = arith.constant 0 : index
    %13 = vector.load %arg9[%c0_21, %c0_22, %c0_23] : memref<2x256x32xf32, #tpu.memory_space<vmem>>, vector<1x256x32xf32>
    %14 = vector.shape_cast %13 : vector<1x256x32xf32> to vector<256x32xf32>
    %c0_24 = arith.constant 0 : index
    %c0_25 = arith.constant 0 : index
    %c0_26 = arith.constant 0 : index
    %15 = vector.load %arg10[%c0_24, %c0_25, %c0_26] : memref<2x1x32xf32, #tpu.memory_space<vmem>>, vector<1x1x32xf32>
    %16 = vector.shape_cast %15 : vector<1x1x32xf32> to vector<1x32xf32>
    %c0_27 = arith.constant 0 : index
    %c0_28 = arith.constant 0 : index
    %c0_29 = arith.constant 0 : index
    %17 = vector.load %arg11[%c0_27, %c0_28, %c0_29] : memref<2x1x32xf32, #tpu.memory_space<vmem>>, vector<1x1x32xf32>
    %18 = vector.shape_cast %17 : vector<1x1x32xf32> to vector<1x32xf32>
    %c0_30 = arith.constant 0 : index
    %c0_31 = arith.constant 0 : index
    %c0_32 = arith.constant 0 : index
    %19 = vector.load %arg12[%c0_30, %c0_31, %c0_32] : memref<2x1x32xf32, #tpu.memory_space<vmem>>, vector<1x1x32xf32>
    %20 = vector.shape_cast %19 : vector<1x1x32xf32> to vector<1x32xf32>
    %c0_33 = arith.constant 0 : index
    %c0_34 = arith.constant 0 : index
    %c0_35 = arith.constant 0 : index
    %21 = vector.load %arg13[%c0_33, %c0_34, %c0_35] : memref<2x32x64xf32, #tpu.memory_space<vmem>>, vector<1x32x64xf32>
    %22 = vector.shape_cast %21 : vector<1x32x64xf32> to vector<32x64xf32>
    %c0_36 = arith.constant 0 : index
    %c0_37 = arith.constant 0 : index
    %c0_38 = arith.constant 0 : index
    %23 = vector.load %arg14[%c0_36, %c0_37, %c0_38] : memref<2x1x64xf32, #tpu.memory_space<vmem>>, vector<1x1x64xf32>
    %24 = vector.shape_cast %23 : vector<1x1x64xf32> to vector<1x64xf32>
    %c0_39 = arith.constant 0 : index
    %c0_40 = arith.constant 0 : index
    %c0_41 = arith.constant 0 : index
    %25 = vector.load %arg15[%c0_39, %c0_40, %c0_41] : memref<2x64x32xf32, #tpu.memory_space<vmem>>, vector<1x64x32xf32>
    %26 = vector.shape_cast %25 : vector<1x64x32xf32> to vector<64x32xf32>
    %c0_42 = arith.constant 0 : index
    %c0_43 = arith.constant 0 : index
    %c0_44 = arith.constant 0 : index
    %27 = vector.load %arg16[%c0_42, %c0_43, %c0_44] : memref<2x1x32xf32, #tpu.memory_space<vmem>>, vector<1x1x32xf32>
    %28 = vector.shape_cast %27 : vector<1x1x32xf32> to vector<1x32xf32>
    %29 = vector.shape_cast %0 : vector<2x8x32xf32> to vector<16x32xf32>
    %cst = arith.constant dense<0.000000e+00> : vector<16xf32>
    %30 = vector.multi_reduction <add>, %29, %cst [1] : vector<16x32xf32> to vector<16xf32>
    %31 = vector.shape_cast %30 : vector<16xf32> to vector<16x1xf32>
    %cst_45 = arith.constant 3.200000e+01 : f32
    %32 = vector.broadcast %cst_45 : f32 to vector<16x1xf32>
    %33 = arith.divf %31, %32 : vector<16x1xf32>
    %34 = vector.broadcast %33 : vector<16x1xf32> to vector<16x32xf32>
    %35 = arith.subf %29, %34 : vector<16x32xf32>
    %36 = arith.mulf %35, %35 : vector<16x32xf32>
    %cst_46 = arith.constant dense<0.000000e+00> : vector<16xf32>
    %37 = vector.multi_reduction <add>, %36, %cst_46 [1] : vector<16x32xf32> to vector<16xf32>
    %38 = vector.shape_cast %37 : vector<16xf32> to vector<16x1xf32>
    %cst_47 = arith.constant 3.200000e+01 : f32
    %39 = vector.broadcast %cst_47 : f32 to vector<16x1xf32>
    %40 = arith.divf %38, %39 : vector<16x1xf32>
    %41 = vector.broadcast %33 : vector<16x1xf32> to vector<16x32xf32>
    %42 = arith.subf %29, %41 : vector<16x32xf32>
    %cst_48 = arith.constant 9.99999997E-7 : f32
    %43 = vector.broadcast %cst_48 : f32 to vector<16x1xf32>
    %44 = arith.addf %40, %43 : vector<16x1xf32>
    %45 = math.rsqrt %44 : vector<16x1xf32>
    %46 = vector.broadcast %45 : vector<16x1xf32> to vector<16x32xf32>
    %47 = arith.mulf %42, %46 : vector<16x32xf32>
    %48 = vector.broadcast %4 : vector<1x32xf32> to vector<16x32xf32>
    %49 = arith.mulf %47, %48 : vector<16x32xf32>
    %50 = vector.broadcast %6 : vector<1x32xf32> to vector<16x32xf32>
    %51 = arith.addf %49, %50 : vector<16x32xf32>
    %52 = vector.shape_cast %51 : vector<16x32xf32> to vector<2x8x32xf32>
    %53 = vector.extract_strided_slice %52 {offsets = [0, 0, 0], sizes = [2, 1, 32], strides = [1, 1, 1]} : vector<2x8x32xf32> to vector<2x1x32xf32>
    %54 = vector.shape_cast %53 : vector<2x1x32xf32> to vector<2x32xf32>
    %cst_49 = arith.constant dense<0.000000e+00> : vector<16x256xf32>
    %55 = tpu.matmul %51, %10, %cst_49 {dimension_numbers = #tpu.dot_dimension_numbers<[1], [0], [0], [1], [0, 0, 1, 1], [], []>} : vector<16x32xf32>, vector<32x256xf32>, vector<16x256xf32> -> vector<16x256xf32>
    %cst_50 = arith.constant dense<0.000000e+00> : vector<16x256xf32>
    %56 = tpu.matmul %51, %12, %cst_50 {dimension_numbers = #tpu.dot_dimension_numbers<[1], [0], [0], [1], [0, 0, 1, 1], [], []>} : vector<16x32xf32>, vector<32x256xf32>, vector<16x256xf32> -> vector<16x256xf32>
    %cst_51 = arith.constant dense<0.000000e+00> : vector<2x256xf32>
    %57 = tpu.matmul %54, %8, %cst_51 {dimension_numbers = #tpu.dot_dimension_numbers<[1], [0], [0], [1], [0, 0, 1, 1], [], []>} : vector<2x32xf32>, vector<32x256xf32>, vector<2x256xf32> -> vector<2x256xf32>
    %58 = vector.shape_cast %55 : vector<16x256xf32> to vector<2x8x256xf32>
    %59 = vector.shape_cast %57 : vector<2x256xf32> to vector<2x1x256xf32>
    %60 = vector.broadcast %59 : vector<2x1x256xf32> to vector<2x8x256xf32>
    %61 = arith.mulf %58, %60 : vector<2x8x256xf32>
    %62 = vector.shape_cast %61 : vector<2x8x256xf32> to vector<16x256xf32>
    %cst_52 = arith.constant dense<0.000000e+00> : vector<16x8xf32>
    %63 = tpu.matmul %62, %1, %cst_52 {dimension_numbers = #tpu.dot_dimension_numbers<[1], [0], [0], [1], [0, 0, 1, 1], [], []>} : vector<16x256xf32>, vector<256x8xf32>, vector<16x8xf32> -> vector<16x8xf32>
    %cst_53 = arith.constant 5.000000e-01 : f32
    %64 = vector.broadcast %cst_53 : f32 to vector<16x8xf32>
    %65 = arith.mulf %63, %64 : vector<16x8xf32>
    %66 = vector.shape_cast %65 : vector<16x8xf32> to vector<2x8x8xf32>
    %cst_54 = arith.constant dense<0xFF800000> : vector<2x8xf32>
    %67 = vector.multi_reduction <maximumf>, %66, %cst_54 [1] : vector<2x8x8xf32> to vector<2x8xf32>
    %68 = vector.shape_cast %67 : vector<2x8xf32> to vector<2x1x8xf32>
    %69 = vector.broadcast %68 : vector<2x1x8xf32> to vector<2x8x8xf32>
    %70 = arith.subf %66, %69 : vector<2x8x8xf32>
    %71 = math.exp %70 : vector<2x8x8xf32>
    %cst_55 = arith.constant dense<0.000000e+00> : vector<2x8xf32>
    %72 = vector.multi_reduction <add>, %71, %cst_55 [1] : vector<2x8x8xf32> to vector<2x8xf32>
    %73 = vector.shape_cast %72 : vector<2x8xf32> to vector<2x1x8xf32>
    %74 = vector.broadcast %73 : vector<2x1x8xf32> to vector<2x8x8xf32>
    %75 = arith.divf %71, %74 : vector<2x8x8xf32>
    %76 = vector.shape_cast %75 : vector<2x8x8xf32> to vector<16x8xf32>
    %cst_56 = arith.constant dense<0.000000e+00> : vector<16x256xf32>
    %77 = tpu.matmul %76, %2, %cst_56 {dimension_numbers = #tpu.dot_dimension_numbers<[1], [0], [0], [1], [0, 0, 1, 1], [], []>} : vector<16x8xf32>, vector<8x256xf32>, vector<16x256xf32> -> vector<16x256xf32>
    %78 = arith.mulf %77, %56 : vector<16x256xf32>
    %79 = vector.shape_cast %78 : vector<16x256xf32> to vector<2x8x256xf32>
    %cst_57 = arith.constant dense<0.000000e+00> : vector<2x256xf32>
    %80 = vector.multi_reduction <add>, %79, %cst_57 [1] : vector<2x8x256xf32> to vector<2x256xf32>
    %cst_58 = arith.constant dense<0.000000e+00> : vector<2x32xf32>
    %81 = tpu.matmul %80, %14, %cst_58 {dimension_numbers = #tpu.dot_dimension_numbers<[1], [0], [0], [1], [0, 0, 1, 1], [], []>} : vector<2x256xf32>, vector<256x32xf32>, vector<2x32xf32> -> vector<2x32xf32>
    %82 = vector.broadcast %16 : vector<1x32xf32> to vector<2x32xf32>
    %83 = arith.addf %81, %82 : vector<2x32xf32>
    %84 = vector.shape_cast %83 : vector<2x32xf32> to vector<2x1x32xf32>
    %85 = vector.broadcast %84 : vector<2x1x32xf32> to vector<2x8x32xf32>
    %86 = arith.addf %0, %85 : vector<2x8x32xf32>
    %87 = vector.shape_cast %86 : vector<2x8x32xf32> to vector<16x32xf32>
    %cst_59 = arith.constant dense<0.000000e+00> : vector<16xf32>
    %88 = vector.multi_reduction <add>, %87, %cst_59 [1] : vector<16x32xf32> to vector<16xf32>
    %89 = vector.shape_cast %88 : vector<16xf32> to vector<16x1xf32>
    %cst_60 = arith.constant 3.200000e+01 : f32
    %90 = vector.broadcast %cst_60 : f32 to vector<16x1xf32>
    %91 = arith.divf %89, %90 : vector<16x1xf32>
    %92 = vector.broadcast %91 : vector<16x1xf32> to vector<16x32xf32>
    %93 = arith.subf %87, %92 : vector<16x32xf32>
    %94 = arith.mulf %93, %93 : vector<16x32xf32>
    %cst_61 = arith.constant dense<0.000000e+00> : vector<16xf32>
    %95 = vector.multi_reduction <add>, %94, %cst_61 [1] : vector<16x32xf32> to vector<16xf32>
    %96 = vector.shape_cast %95 : vector<16xf32> to vector<16x1xf32>
    %cst_62 = arith.constant 3.200000e+01 : f32
    %97 = vector.broadcast %cst_62 : f32 to vector<16x1xf32>
    %98 = arith.divf %96, %97 : vector<16x1xf32>
    %99 = vector.broadcast %91 : vector<16x1xf32> to vector<16x32xf32>
    %100 = arith.subf %87, %99 : vector<16x32xf32>
    %cst_63 = arith.constant 9.99999997E-7 : f32
    %101 = vector.broadcast %cst_63 : f32 to vector<16x1xf32>
    %102 = arith.addf %98, %101 : vector<16x1xf32>
    %103 = math.rsqrt %102 : vector<16x1xf32>
    %104 = vector.broadcast %103 : vector<16x1xf32> to vector<16x32xf32>
    %105 = arith.mulf %100, %104 : vector<16x32xf32>
    %106 = vector.broadcast %18 : vector<1x32xf32> to vector<16x32xf32>
    %107 = arith.mulf %105, %106 : vector<16x32xf32>
    %108 = vector.broadcast %20 : vector<1x32xf32> to vector<16x32xf32>
    %109 = arith.addf %107, %108 : vector<16x32xf32>
    %cst_64 = arith.constant dense<0.000000e+00> : vector<16x64xf32>
    %110 = tpu.matmul %109, %22, %cst_64 {dimension_numbers = #tpu.dot_dimension_numbers<[1], [0], [0], [1], [0, 0, 1, 1], [], []>} : vector<16x32xf32>, vector<32x64xf32>, vector<16x64xf32> -> vector<16x64xf32>
    %111 = vector.broadcast %24 : vector<1x64xf32> to vector<16x64xf32>
    %112 = arith.addf %110, %111 : vector<16x64xf32>
    %cst_65 = arith.constant 5.000000e-01 : f32
    %113 = vector.broadcast %cst_65 : f32 to vector<16x64xf32>
    %114 = arith.mulf %113, %112 : vector<16x64xf32>
    %cst_66 = arith.constant 0.707106769 : f32
    %115 = vector.broadcast %cst_66 : f32 to vector<16x64xf32>
    %116 = arith.mulf %112, %115 : vector<16x64xf32>
    %117 = math.erf %116 : vector<16x64xf32>
    %cst_67 = arith.constant 1.000000e+00 : f32
    %118 = vector.broadcast %cst_67 : f32 to vector<16x64xf32>
    %119 = arith.addf %118, %117 : vector<16x64xf32>
    %120 = arith.mulf %114, %119 : vector<16x64xf32>
    %cst_68 = arith.constant dense<0.000000e+00> : vector<16x32xf32>
    %121 = tpu.matmul %120, %26, %cst_68 {dimension_numbers = #tpu.dot_dimension_numbers<[1], [0], [0], [1], [0, 0, 1, 1], [], []>} : vector<16x64xf32>, vector<64x32xf32>, vector<16x32xf32> -> vector<16x32xf32>
    %122 = vector.broadcast %28 : vector<1x32xf32> to vector<16x32xf32>
    %123 = arith.addf %121, %122 : vector<16x32xf32>
    %124 = arith.addf %87, %123 : vector<16x32xf32>
    %125 = vector.shape_cast %124 : vector<16x32xf32> to vector<2x8x32xf32>
    %c1 = arith.constant 1 : index
    %c0_69 = arith.constant 0 : index
    %c0_70 = arith.constant 0 : index
    %126 = vector.load %arg4[%c1, %c0_69, %c0_70] : memref<2x1x32xf32, #tpu.memory_space<vmem>>, vector<1x1x32xf32>
    %127 = vector.shape_cast %126 : vector<1x1x32xf32> to vector<1x32xf32>
    %c1_71 = arith.constant 1 : index
    %c0_72 = arith.constant 0 : index
    %c0_73 = arith.constant 0 : index
    %128 = vector.load %arg5[%c1_71, %c0_72, %c0_73] : memref<2x1x32xf32, #tpu.memory_space<vmem>>, vector<1x1x32xf32>
    %129 = vector.shape_cast %128 : vector<1x1x32xf32> to vector<1x32xf32>
    %c1_74 = arith.constant 1 : index
    %c0_75 = arith.constant 0 : index
    %c0_76 = arith.constant 0 : index
    %130 = vector.load %arg6[%c1_74, %c0_75, %c0_76] : memref<2x32x256xf32, #tpu.memory_space<vmem>>, vector<1x32x256xf32>
    %131 = vector.shape_cast %130 : vector<1x32x256xf32> to vector<32x256xf32>
    %c1_77 = arith.constant 1 : index
    %c0_78 = arith.constant 0 : index
    %c0_79 = arith.constant 0 : index
    %132 = vector.load %arg7[%c1_77, %c0_78, %c0_79] : memref<2x32x256xf32, #tpu.memory_space<vmem>>, vector<1x32x256xf32>
    %133 = vector.shape_cast %132 : vector<1x32x256xf32> to vector<32x256xf32>
    %c1_80 = arith.constant 1 : index
    %c0_81 = arith.constant 0 : index
    %c0_82 = arith.constant 0 : index
    %134 = vector.load %arg8[%c1_80, %c0_81, %c0_82] : memref<2x32x256xf32, #tpu.memory_space<vmem>>, vector<1x32x256xf32>
    %135 = vector.shape_cast %134 : vector<1x32x256xf32> to vector<32x256xf32>
    %c1_83 = arith.constant 1 : index
    %c0_84 = arith.constant 0 : index
    %c0_85 = arith.constant 0 : index
    %136 = vector.load %arg9[%c1_83, %c0_84, %c0_85] : memref<2x256x32xf32, #tpu.memory_space<vmem>>, vector<1x256x32xf32>
    %137 = vector.shape_cast %136 : vector<1x256x32xf32> to vector<256x32xf32>
    %c1_86 = arith.constant 1 : index
    %c0_87 = arith.constant 0 : index
    %c0_88 = arith.constant 0 : index
    %138 = vector.load %arg10[%c1_86, %c0_87, %c0_88] : memref<2x1x32xf32, #tpu.memory_space<vmem>>, vector<1x1x32xf32>
    %139 = vector.shape_cast %138 : vector<1x1x32xf32> to vector<1x32xf32>
    %c1_89 = arith.constant 1 : index
    %c0_90 = arith.constant 0 : index
    %c0_91 = arith.constant 0 : index
    %140 = vector.load %arg11[%c1_89, %c0_90, %c0_91] : memref<2x1x32xf32, #tpu.memory_space<vmem>>, vector<1x1x32xf32>
    %141 = vector.shape_cast %140 : vector<1x1x32xf32> to vector<1x32xf32>
    %c1_92 = arith.constant 1 : index
    %c0_93 = arith.constant 0 : index
    %c0_94 = arith.constant 0 : index
    %142 = vector.load %arg12[%c1_92, %c0_93, %c0_94] : memref<2x1x32xf32, #tpu.memory_space<vmem>>, vector<1x1x32xf32>
    %143 = vector.shape_cast %142 : vector<1x1x32xf32> to vector<1x32xf32>
    %c1_95 = arith.constant 1 : index
    %c0_96 = arith.constant 0 : index
    %c0_97 = arith.constant 0 : index
    %144 = vector.load %arg13[%c1_95, %c0_96, %c0_97] : memref<2x32x64xf32, #tpu.memory_space<vmem>>, vector<1x32x64xf32>
    %145 = vector.shape_cast %144 : vector<1x32x64xf32> to vector<32x64xf32>
    %c1_98 = arith.constant 1 : index
    %c0_99 = arith.constant 0 : index
    %c0_100 = arith.constant 0 : index
    %146 = vector.load %arg14[%c1_98, %c0_99, %c0_100] : memref<2x1x64xf32, #tpu.memory_space<vmem>>, vector<1x1x64xf32>
    %147 = vector.shape_cast %146 : vector<1x1x64xf32> to vector<1x64xf32>
    %c1_101 = arith.constant 1 : index
    %c0_102 = arith.constant 0 : index
    %c0_103 = arith.constant 0 : index
    %148 = vector.load %arg15[%c1_101, %c0_102, %c0_103] : memref<2x64x32xf32, #tpu.memory_space<vmem>>, vector<1x64x32xf32>
    %149 = vector.shape_cast %148 : vector<1x64x32xf32> to vector<64x32xf32>
    %c1_104 = arith.constant 1 : index
    %c0_105 = arith.constant 0 : index
    %c0_106 = arith.constant 0 : index
    %150 = vector.load %arg16[%c1_104, %c0_105, %c0_106] : memref<2x1x32xf32, #tpu.memory_space<vmem>>, vector<1x1x32xf32>
    %151 = vector.shape_cast %150 : vector<1x1x32xf32> to vector<1x32xf32>
    %152 = vector.shape_cast %125 : vector<2x8x32xf32> to vector<16x32xf32>
    %cst_107 = arith.constant dense<0.000000e+00> : vector<16xf32>
    %153 = vector.multi_reduction <add>, %152, %cst_107 [1] : vector<16x32xf32> to vector<16xf32>
    %154 = vector.shape_cast %153 : vector<16xf32> to vector<16x1xf32>
    %cst_108 = arith.constant 3.200000e+01 : f32
    %155 = vector.broadcast %cst_108 : f32 to vector<16x1xf32>
    %156 = arith.divf %154, %155 : vector<16x1xf32>
    %157 = vector.broadcast %156 : vector<16x1xf32> to vector<16x32xf32>
    %158 = arith.subf %152, %157 : vector<16x32xf32>
    %159 = arith.mulf %158, %158 : vector<16x32xf32>
    %cst_109 = arith.constant dense<0.000000e+00> : vector<16xf32>
    %160 = vector.multi_reduction <add>, %159, %cst_109 [1] : vector<16x32xf32> to vector<16xf32>
    %161 = vector.shape_cast %160 : vector<16xf32> to vector<16x1xf32>
    %cst_110 = arith.constant 3.200000e+01 : f32
    %162 = vector.broadcast %cst_110 : f32 to vector<16x1xf32>
    %163 = arith.divf %161, %162 : vector<16x1xf32>
    %164 = vector.broadcast %156 : vector<16x1xf32> to vector<16x32xf32>
    %165 = arith.subf %152, %164 : vector<16x32xf32>
    %cst_111 = arith.constant 9.99999997E-7 : f32
    %166 = vector.broadcast %cst_111 : f32 to vector<16x1xf32>
    %167 = arith.addf %163, %166 : vector<16x1xf32>
    %168 = math.rsqrt %167 : vector<16x1xf32>
    %169 = vector.broadcast %168 : vector<16x1xf32> to vector<16x32xf32>
    %170 = arith.mulf %165, %169 : vector<16x32xf32>
    %171 = vector.broadcast %127 : vector<1x32xf32> to vector<16x32xf32>
    %172 = arith.mulf %170, %171 : vector<16x32xf32>
    %173 = vector.broadcast %129 : vector<1x32xf32> to vector<16x32xf32>
    %174 = arith.addf %172, %173 : vector<16x32xf32>
    %175 = vector.shape_cast %174 : vector<16x32xf32> to vector<2x8x32xf32>
    %176 = vector.extract_strided_slice %175 {offsets = [0, 0, 0], sizes = [2, 1, 32], strides = [1, 1, 1]} : vector<2x8x32xf32> to vector<2x1x32xf32>
    %177 = vector.shape_cast %176 : vector<2x1x32xf32> to vector<2x32xf32>
    %cst_112 = arith.constant dense<0.000000e+00> : vector<16x256xf32>
    %178 = tpu.matmul %174, %133, %cst_112 {dimension_numbers = #tpu.dot_dimension_numbers<[1], [0], [0], [1], [0, 0, 1, 1], [], []>} : vector<16x32xf32>, vector<32x256xf32>, vector<16x256xf32> -> vector<16x256xf32>
    %cst_113 = arith.constant dense<0.000000e+00> : vector<16x256xf32>
    %179 = tpu.matmul %174, %135, %cst_113 {dimension_numbers = #tpu.dot_dimension_numbers<[1], [0], [0], [1], [0, 0, 1, 1], [], []>} : vector<16x32xf32>, vector<32x256xf32>, vector<16x256xf32> -> vector<16x256xf32>
    %cst_114 = arith.constant dense<0.000000e+00> : vector<2x256xf32>
    %180 = tpu.matmul %177, %131, %cst_114 {dimension_numbers = #tpu.dot_dimension_numbers<[1], [0], [0], [1], [0, 0, 1, 1], [], []>} : vector<2x32xf32>, vector<32x256xf32>, vector<2x256xf32> -> vector<2x256xf32>
    %181 = vector.shape_cast %178 : vector<16x256xf32> to vector<2x8x256xf32>
    %182 = vector.shape_cast %180 : vector<2x256xf32> to vector<2x1x256xf32>
    %183 = vector.broadcast %182 : vector<2x1x256xf32> to vector<2x8x256xf32>
    %184 = arith.mulf %181, %183 : vector<2x8x256xf32>
    %185 = vector.shape_cast %184 : vector<2x8x256xf32> to vector<16x256xf32>
    %cst_115 = arith.constant dense<0.000000e+00> : vector<16x8xf32>
    %186 = tpu.matmul %185, %1, %cst_115 {dimension_numbers = #tpu.dot_dimension_numbers<[1], [0], [0], [1], [0, 0, 1, 1], [], []>} : vector<16x256xf32>, vector<256x8xf32>, vector<16x8xf32> -> vector<16x8xf32>
    %cst_116 = arith.constant 5.000000e-01 : f32
    %187 = vector.broadcast %cst_116 : f32 to vector<16x8xf32>
    %188 = arith.mulf %186, %187 : vector<16x8xf32>
    %189 = vector.shape_cast %188 : vector<16x8xf32> to vector<2x8x8xf32>
    %cst_117 = arith.constant dense<0xFF800000> : vector<2x8xf32>
    %190 = vector.multi_reduction <maximumf>, %189, %cst_117 [1] : vector<2x8x8xf32> to vector<2x8xf32>
    %191 = vector.shape_cast %190 : vector<2x8xf32> to vector<2x1x8xf32>
    %192 = vector.broadcast %191 : vector<2x1x8xf32> to vector<2x8x8xf32>
    %193 = arith.subf %189, %192 : vector<2x8x8xf32>
    %194 = math.exp %193 : vector<2x8x8xf32>
    %cst_118 = arith.constant dense<0.000000e+00> : vector<2x8xf32>
    %195 = vector.multi_reduction <add>, %194, %cst_118 [1] : vector<2x8x8xf32> to vector<2x8xf32>
    %196 = vector.shape_cast %195 : vector<2x8xf32> to vector<2x1x8xf32>
    %197 = vector.broadcast %196 : vector<2x1x8xf32> to vector<2x8x8xf32>
    %198 = arith.divf %194, %197 : vector<2x8x8xf32>
    %199 = vector.shape_cast %198 : vector<2x8x8xf32> to vector<16x8xf32>
    %cst_119 = arith.constant dense<0.000000e+00> : vector<16x256xf32>
    %200 = tpu.matmul %199, %2, %cst_119 {dimension_numbers = #tpu.dot_dimension_numbers<[1], [0], [0], [1], [0, 0, 1, 1], [], []>} : vector<16x8xf32>, vector<8x256xf32>, vector<16x256xf32> -> vector<16x256xf32>
    %201 = arith.mulf %200, %179 : vector<16x256xf32>
    %202 = vector.shape_cast %201 : vector<16x256xf32> to vector<2x8x256xf32>
    %cst_120 = arith.constant dense<0.000000e+00> : vector<2x256xf32>
    %203 = vector.multi_reduction <add>, %202, %cst_120 [1] : vector<2x8x256xf32> to vector<2x256xf32>
    %cst_121 = arith.constant dense<0.000000e+00> : vector<2x32xf32>
    %204 = tpu.matmul %203, %137, %cst_121 {dimension_numbers = #tpu.dot_dimension_numbers<[1], [0], [0], [1], [0, 0, 1, 1], [], []>} : vector<2x256xf32>, vector<256x32xf32>, vector<2x32xf32> -> vector<2x32xf32>
    %205 = vector.broadcast %139 : vector<1x32xf32> to vector<2x32xf32>
    %206 = arith.addf %204, %205 : vector<2x32xf32>
    %207 = vector.shape_cast %206 : vector<2x32xf32> to vector<2x1x32xf32>
    %208 = vector.broadcast %207 : vector<2x1x32xf32> to vector<2x8x32xf32>
    %209 = arith.addf %125, %208 : vector<2x8x32xf32>
    %210 = vector.shape_cast %209 : vector<2x8x32xf32> to vector<16x32xf32>
    %cst_122 = arith.constant dense<0.000000e+00> : vector<16xf32>
    %211 = vector.multi_reduction <add>, %210, %cst_122 [1] : vector<16x32xf32> to vector<16xf32>
    %212 = vector.shape_cast %211 : vector<16xf32> to vector<16x1xf32>
    %cst_123 = arith.constant 3.200000e+01 : f32
    %213 = vector.broadcast %cst_123 : f32 to vector<16x1xf32>
    %214 = arith.divf %212, %213 : vector<16x1xf32>
    %215 = vector.broadcast %214 : vector<16x1xf32> to vector<16x32xf32>
    %216 = arith.subf %210, %215 : vector<16x32xf32>
    %217 = arith.mulf %216, %216 : vector<16x32xf32>
    %cst_124 = arith.constant dense<0.000000e+00> : vector<16xf32>
    %218 = vector.multi_reduction <add>, %217, %cst_124 [1] : vector<16x32xf32> to vector<16xf32>
    %219 = vector.shape_cast %218 : vector<16xf32> to vector<16x1xf32>
    %cst_125 = arith.constant 3.200000e+01 : f32
    %220 = vector.broadcast %cst_125 : f32 to vector<16x1xf32>
    %221 = arith.divf %219, %220 : vector<16x1xf32>
    %222 = vector.broadcast %214 : vector<16x1xf32> to vector<16x32xf32>
    %223 = arith.subf %210, %222 : vector<16x32xf32>
    %cst_126 = arith.constant 9.99999997E-7 : f32
    %224 = vector.broadcast %cst_126 : f32 to vector<16x1xf32>
    %225 = arith.addf %221, %224 : vector<16x1xf32>
    %226 = math.rsqrt %225 : vector<16x1xf32>
    %227 = vector.broadcast %226 : vector<16x1xf32> to vector<16x32xf32>
    %228 = arith.mulf %223, %227 : vector<16x32xf32>
    %229 = vector.broadcast %141 : vector<1x32xf32> to vector<16x32xf32>
    %230 = arith.mulf %228, %229 : vector<16x32xf32>
    %231 = vector.broadcast %143 : vector<1x32xf32> to vector<16x32xf32>
    %232 = arith.addf %230, %231 : vector<16x32xf32>
    %cst_127 = arith.constant dense<0.000000e+00> : vector<16x64xf32>
    %233 = tpu.matmul %232, %145, %cst_127 {dimension_numbers = #tpu.dot_dimension_numbers<[1], [0], [0], [1], [0, 0, 1, 1], [], []>} : vector<16x32xf32>, vector<32x64xf32>, vector<16x64xf32> -> vector<16x64xf32>
    %234 = vector.broadcast %147 : vector<1x64xf32> to vector<16x64xf32>
    %235 = arith.addf %233, %234 : vector<16x64xf32>
    %cst_128 = arith.constant 5.000000e-01 : f32
    %236 = vector.broadcast %cst_128 : f32 to vector<16x64xf32>
    %237 = arith.mulf %236, %235 : vector<16x64xf32>
    %cst_129 = arith.constant 0.707106769 : f32
    %238 = vector.broadcast %cst_129 : f32 to vector<16x64xf32>
    %239 = arith.mulf %235, %238 : vector<16x64xf32>
    %240 = math.erf %239 : vector<16x64xf32>
    %cst_130 = arith.constant 1.000000e+00 : f32
    %241 = vector.broadcast %cst_130 : f32 to vector<16x64xf32>
    %242 = arith.addf %241, %240 : vector<16x64xf32>
    %243 = arith.mulf %237, %242 : vector<16x64xf32>
    %cst_131 = arith.constant dense<0.000000e+00> : vector<16x32xf32>
    %244 = tpu.matmul %243, %149, %cst_131 {dimension_numbers = #tpu.dot_dimension_numbers<[1], [0], [0], [1], [0, 0, 1, 1], [], []>} : vector<16x64xf32>, vector<64x32xf32>, vector<16x32xf32> -> vector<16x32xf32>
    %245 = vector.broadcast %151 : vector<1x32xf32> to vector<16x32xf32>
    %246 = arith.addf %244, %245 : vector<16x32xf32>
    %247 = arith.addf %210, %246 : vector<16x32xf32>
    %248 = vector.shape_cast %247 : vector<16x32xf32> to vector<2x8x32xf32>
    %249 = vector.extract_strided_slice %248 {offsets = [0, 0, 0], sizes = [2, 1, 32], strides = [1, 1, 1]} : vector<2x8x32xf32> to vector<2x1x32xf32>
    %250 = vector.shape_cast %249 : vector<2x1x32xf32> to vector<2x32xf32>
    %c0_132 = arith.constant 0 : index
    %c0_133 = arith.constant 0 : index
    %251 = vector.load %arg17[%c0_132, %c0_133] : memref<1x32xf32, #tpu.memory_space<vmem>>, vector<1x32xf32>
    %c0_134 = arith.constant 0 : index
    %c0_135 = arith.constant 0 : index
    %252 = vector.load %arg18[%c0_134, %c0_135] : memref<1x32xf32, #tpu.memory_space<vmem>>, vector<1x32xf32>
    %cst_136 = arith.constant dense<0.000000e+00> : vector<2xf32>
    %253 = vector.multi_reduction <add>, %250, %cst_136 [1] : vector<2x32xf32> to vector<2xf32>
    %254 = vector.shape_cast %253 : vector<2xf32> to vector<2x1xf32>
    %cst_137 = arith.constant 3.200000e+01 : f32
    %255 = vector.broadcast %cst_137 : f32 to vector<2x1xf32>
    %256 = arith.divf %254, %255 : vector<2x1xf32>
    %257 = vector.broadcast %256 : vector<2x1xf32> to vector<2x32xf32>
    %258 = arith.subf %250, %257 : vector<2x32xf32>
    %259 = arith.mulf %258, %258 : vector<2x32xf32>
    %cst_138 = arith.constant dense<0.000000e+00> : vector<2xf32>
    %260 = vector.multi_reduction <add>, %259, %cst_138 [1] : vector<2x32xf32> to vector<2xf32>
    %261 = vector.shape_cast %260 : vector<2xf32> to vector<2x1xf32>
    %cst_139 = arith.constant 3.200000e+01 : f32
    %262 = vector.broadcast %cst_139 : f32 to vector<2x1xf32>
    %263 = arith.divf %261, %262 : vector<2x1xf32>
    %264 = vector.broadcast %256 : vector<2x1xf32> to vector<2x32xf32>
    %265 = arith.subf %250, %264 : vector<2x32xf32>
    %cst_140 = arith.constant 9.99999997E-7 : f32
    %266 = vector.broadcast %cst_140 : f32 to vector<2x1xf32>
    %267 = arith.addf %263, %266 : vector<2x1xf32>
    %268 = math.rsqrt %267 : vector<2x1xf32>
    %269 = vector.broadcast %268 : vector<2x1xf32> to vector<2x32xf32>
    %270 = arith.mulf %265, %269 : vector<2x32xf32>
    %271 = vector.broadcast %251 : vector<1x32xf32> to vector<2x32xf32>
    %272 = arith.mulf %270, %271 : vector<2x32xf32>
    %273 = vector.broadcast %252 : vector<1x32xf32> to vector<2x32xf32>
    %274 = arith.addf %272, %273 : vector<2x32xf32>
    %c0_141 = arith.constant 0 : index
    %c0_142 = arith.constant 0 : index
    %275 = vector.load %arg19[%c0_141, %c0_142] : memref<2x32xf32, #tpu.memory_space<vmem>>, vector<2x32xf32>
    tpu.vector_store %arg19[%c0_141, %c0_142], %274 {strides = array<i32>} : memref<2x32xf32, #tpu.memory_space<vmem>>, vector<2x32xf32>,
    return
  }
  func.func @transform_0(%arg0: i32) -> (i32, i32, i32) {
    %c0_i32 = arith.constant 0 : i32
    %c0_i32_0 = arith.constant 0 : i32
    %c0_i32_1 = arith.constant 0 : i32
    return %arg0, %c0_i32, %c0_i32_0 : i32, i32, i32
  }
  func.func @transform_1(%arg0: i32) -> (i32, i32) {
    %c0_i32 = arith.constant 0 : i32
    %c0_i32_0 = arith.constant 0 : i32
    %c0_i32_1 = arith.constant 0 : i32
    return %c0_i32, %c0_i32_0 : i32, i32
  }
  func.func @transform_2(%arg0: i32) -> (i32, i32) {
    %c0_i32 = arith.constant 0 : i32
    %c0_i32_0 = arith.constant 0 : i32
    %c0_i32_1 = arith.constant 0 : i32
    return %c0_i32, %c0_i32_0 : i32, i32
  }
  func.func @transform_3(%arg0: i32) -> (i32, i32, i32) {
    %c0_i32 = arith.constant 0 : i32
    %c0_i32_0 = arith.constant 0 : i32
    %c0_i32_1 = arith.constant 0 : i32
    %c0_i32_2 = arith.constant 0 : i32
    return %c0_i32, %c0_i32_0, %c0_i32_1 : i32, i32, i32
  }
  func.func @transform_4(%arg0: i32) -> (i32, i32, i32) {
    %c0_i32 = arith.constant 0 : i32
    %c0_i32_0 = arith.constant 0 : i32
    %c0_i32_1 = arith.constant 0 : i32
    %c0_i32_2 = arith.constant 0 : i32
    return %c0_i32, %c0_i32_0, %c0_i32_1 : i32, i32, i32
  }
  func.func @transform_5(%arg0: i32) -> (i32, i32, i32) {
    %c0_i32 = arith.constant 0 : i32
    %c0_i32_0 = arith.constant 0 : i32
    %c0_i32_1 = arith.constant 0 : i32
    %c0_i32_2 = arith.constant 0 : i32
    return %c0_i32, %c0_i32_0, %c0_i32_1 : i32, i32, i32
  }
  func.func @transform_6(%arg0: i32) -> (i32, i32, i32) {
    %c0_i32 = arith.constant 0 : i32
    %c0_i32_0 = arith.constant 0 : i32
    %c0_i32_1 = arith.constant 0 : i32
    %c0_i32_2 = arith.constant 0 : i32
    return %c0_i32, %c0_i32_0, %c0_i32_1 : i32, i32, i32
  }
  func.func @transform_7(%arg0: i32) -> (i32, i32, i32) {
    %c0_i32 = arith.constant 0 : i32
    %c0_i32_0 = arith.constant 0 : i32
    %c0_i32_1 = arith.constant 0 : i32
    %c0_i32_2 = arith.constant 0 : i32
    return %c0_i32, %c0_i32_0, %c0_i32_1 : i32, i32, i32
  }
  func.func @transform_8(%arg0: i32) -> (i32, i32, i32) {
    %c0_i32 = arith.constant 0 : i32
    %c0_i32_0 = arith.constant 0 : i32
    %c0_i32_1 = arith.constant 0 : i32
    %c0_i32_2 = arith.constant 0 : i32
    return %c0_i32, %c0_i32_0, %c0_i32_1 : i32, i32, i32
  }
  func.func @transform_9(%arg0: i32) -> (i32, i32, i32) {
    %c0_i32 = arith.constant 0 : i32
    %c0_i32_0 = arith.constant 0 : i32
    %c0_i32_1 = arith.constant 0 : i32
    %c0_i32_2 = arith.constant 0 : i32
    return %c0_i32, %c0_i32_0, %c0_i32_1 : i32, i32, i32
  }
  func.func @transform_10(%arg0: i32) -> (i32, i32, i32) {
    %c0_i32 = arith.constant 0 : i32
    %c0_i32_0 = arith.constant 0 : i32
    %c0_i32_1 = arith.constant 0 : i32
    %c0_i32_2 = arith.constant 0 : i32
    return %c0_i32, %c0_i32_0, %c0_i32_1 : i32, i32, i32
  }
  func.func @transform_11(%arg0: i32) -> (i32, i32, i32) {
    %c0_i32 = arith.constant 0 : i32
    %c0_i32_0 = arith.constant 0 : i32
    %c0_i32_1 = arith.constant 0 : i32
    %c0_i32_2 = arith.constant 0 : i32
    return %c0_i32, %c0_i32_0, %c0_i32_1 : i32, i32, i32
  }
  func.func @transform_12(%arg0: i32) -> (i32, i32, i32) {
    %c0_i32 = arith.constant 0 : i32
    %c0_i32_0 = arith.constant 0 : i32
    %c0_i32_1 = arith.constant 0 : i32
    %c0_i32_2 = arith.constant 0 : i32
    return %c0_i32, %c0_i32_0, %c0_i32_1 : i32, i32, i32
  }
  func.func @transform_13(%arg0: i32) -> (i32, i32, i32) {
    %c0_i32 = arith.constant 0 : i32
    %c0_i32_0 = arith.constant 0 : i32
    %c0_i32_1 = arith.constant 0 : i32
    %c0_i32_2 = arith.constant 0 : i32
    return %c0_i32, %c0_i32_0, %c0_i32_1 : i32, i32, i32
  }
  func.func @transform_14(%arg0: i32) -> (i32, i32, i32) {
    %c0_i32 = arith.constant 0 : i32
    %c0_i32_0 = arith.constant 0 : i32
    %c0_i32_1 = arith.constant 0 : i32
    %c0_i32_2 = arith.constant 0 : i32
    return %c0_i32, %c0_i32_0, %c0_i32_1 : i32, i32, i32
  }
  func.func @transform_15(%arg0: i32) -> (i32, i32, i32) {
    %c0_i32 = arith.constant 0 : i32
    %c0_i32_0 = arith.constant 0 : i32
    %c0_i32_1 = arith.constant 0 : i32
    %c0_i32_2 = arith.constant 0 : i32
    return %c0_i32, %c0_i32_0, %c0_i32_1 : i32, i32, i32
  }
  func.func @transform_16(%arg0: i32) -> (i32, i32) {
    %c0_i32 = arith.constant 0 : i32
    %c0_i32_0 = arith.constant 0 : i32
    %c0_i32_1 = arith.constant 0 : i32
    return %c0_i32, %c0_i32_0 : i32, i32
  }
  func.func @transform_17(%arg0: i32) -> (i32, i32) {
    %c0_i32 = arith.constant 0 : i32
    %c0_i32_0 = arith.constant 0 : i32
    %c0_i32_1 = arith.constant 0 : i32
    return %c0_i32, %c0_i32_0 : i32, i32
  }
  func.func @transform_18(%arg0: i32) -> (i32, i32) {
    %c0_i32 = arith.constant 0 : i32
    %c0_i32_0 = arith.constant 0 : i32
    return %arg0, %c0_i32 : i32, i32
  }
}

</mosaic_0001>

<llo_original>
// kernel: tpu_custom_call.1
$region0: #{tpu_custom_call.1}
  #allocation0 [shape = 'u32[]', space=smem, size = 0x4, offset = 0x4, fixed_abs, tag = 'smem constant byte address 0x4 - core index']
  #allocation1 [shape = 'u32[144,128]{1,0:T(1,128)}', space=vmem, size = 0x12000, scoped, tag = 'internal scratch']
  %s0 = inlined_call_operand.vmem [shape: f32[2,8,32], index: 0, kind: input, shape index: {}]
  %s1 = inlined_call_operand.vmem [shape: f32[256,8], index: 1, kind: input, shape index: {}]
  %s2 = inlined_call_operand.vmem [shape: f32[8,256], index: 2, kind: input, shape index: {}]
  %s3 = inlined_call_operand.vmem [shape: f32[2,1,32], index: 3, kind: input, shape index: {}]
  %s4 = inlined_call_operand.vmem [shape: f32[2,1,32], index: 4, kind: input, shape index: {}]
  %s5 = inlined_call_operand.vmem [shape: f32[2,32,256], index: 5, kind: input, shape index: {}]
  %s6 = inlined_call_operand.vmem [shape: f32[2,32,256], index: 6, kind: input, shape index: {}]
  %s7 = inlined_call_operand.vmem [shape: f32[2,32,256], index: 7, kind: input, shape index: {}]
  %s8 = inlined_call_operand.vmem [shape: f32[2,256,32], index: 8, kind: input, shape index: {}]
  %s9 = inlined_call_operand.vmem [shape: f32[2,1,32], index: 9, kind: input, shape index: {}]
  %s10 = inlined_call_operand.vmem [shape: f32[2,1,32], index: 10, kind: input, shape index: {}]
  %s11 = inlined_call_operand.vmem [shape: f32[2,1,32], index: 11, kind: input, shape index: {}]
  %s12 = inlined_call_operand.vmem [shape: f32[2,32,64], index: 12, kind: input, shape index: {}]
  %s13 = inlined_call_operand.vmem [shape: f32[2,1,64], index: 13, kind: input, shape index: {}]
  %s14 = inlined_call_operand.vmem [shape: f32[2,64,32], index: 14, kind: input, shape index: {}]
  %s15 = inlined_call_operand.vmem [shape: f32[2,1,32], index: 15, kind: input, shape index: {}]
  %s16 = inlined_call_operand.vmem [shape: f32[1,32], index: 16, kind: input, shape index: {}]
  %s17 = inlined_call_operand.vmem [shape: f32[1,32], index: 17, kind: input, shape index: {}]
  %s18 = inlined_call_operand.hbm [shape: f32[2,32], index: 18, kind: output, shape index: {}]
  %s19 = sld [smem:[#allocation0]]
  $region82: #{tpu_custom_call.1} parent=0
    _
  %s21 = ssub.s32 1, %s19
  %s22 = scalar_select 0, %s21, %s19
  $region1: #{tpu_custom_call.1} parent=0
    #allocation2 [shape = 'u8[1024]{0}', space=vmem, size = 0x400, scoped, tag = 'output window, operand 0, single buffered']
    #allocation3 [shape = 's32[1]{0}', space=sflag, size = 0x4, scoped, tag = 'scoped memory for tpu_custom_call.1']
    %23 = vsyncpa [#allocation3], 0
    // Predicated region
    $region2: #{tpu_custom_call.1} parent=1 // pred_check
      _
    $region3: #{tpu_custom_call.1} parent=1 // pred_check_branch
      %25 = sbr.rel (0) target = $region5
    $region4: #{tpu_custom_call.1} parent=1 // pred_region
      _
    $region5: #{tpu_custom_call.1} parent=1 // pred_fallthru
      _
    // Predicated region
    $region6: #{tpu_custom_call.1} parent=1 // pred_check
      _
    $region7: #{tpu_custom_call.1} parent=1 // pred_check_branch
      %27 = sbr.rel (0) target = $region9
    $region8: #{tpu_custom_call.1} parent=1 // pred_region
      _
    $region9: #{tpu_custom_call.1} parent=1 // pred_fallthru
      _
    // Predicated region
    $region10: #{tpu_custom_call.1} parent=1 // pred_check
      _
    $region11: #{tpu_custom_call.1} parent=1 // pred_check_branch
      %29 = sbr.rel (0) target = $region13
    $region12: #{tpu_custom_call.1} parent=1 // pred_region
      _
    $region13: #{tpu_custom_call.1} parent=1 // pred_fallthru
      _
    // Predicated region
    $region14: #{tpu_custom_call.1} parent=1 // pred_check
      _
    $region15: #{tpu_custom_call.1} parent=1 // pred_check_branch
      %31 = sbr.rel (0) target = $region17
    $region16: #{tpu_custom_call.1} parent=1 // pred_region
      _
    $region17: #{tpu_custom_call.1} parent=1 // pred_fallthru
      _
    // Predicated region
    $region18: #{tpu_custom_call.1} parent=1 // pred_check
      _
    $region19: #{tpu_custom_call.1} parent=1 // pred_check_branch
      %33 = sbr.rel (0) target = $region21
    $region20: #{tpu_custom_call.1} parent=1 // pred_region
      _
    $region21: #{tpu_custom_call.1} parent=1 // pred_fallthru
      _
    // Predicated region
    $region22: #{tpu_custom_call.1} parent=1 // pred_check
      _
    $region23: #{tpu_custom_call.1} parent=1 // pred_check_branch
      %35 = sbr.rel (0) target = $region25
    $region24: #{tpu_custom_call.1} parent=1 // pred_region
      _
    $region25: #{tpu_custom_call.1} parent=1 // pred_fallthru
      _
    // Predicated region
    $region26: #{tpu_custom_call.1} parent=1 // pred_check
      _
    $region27: #{tpu_custom_call.1} parent=1 // pred_check_branch
      %37 = sbr.rel (0) target = $region29
    $region28: #{tpu_custom_call.1} parent=1 // pred_region
      _
    $region29: #{tpu_custom_call.1} parent=1 // pred_fallthru
      _
    // Predicated region
    $region30: #{tpu_custom_call.1} parent=1 // pred_check
      _
    $region31: #{tpu_custom_call.1} parent=1 // pred_check_branch
      %39 = sbr.rel (0) target = $region33
    $region32: #{tpu_custom_call.1} parent=1 // pred_region
      _
    $region33: #{tpu_custom_call.1} parent=1 // pred_fallthru
      _
    // Predicated region
    $region34: #{tpu_custom_call.1} parent=1 // pred_check
      _
    $region35: #{tpu_custom_call.1} parent=1 // pred_check_branch
      %41 = sbr.rel (0) target = $region37
    $region36: #{tpu_custom_call.1} parent=1 // pred_region
      _
    $region37: #{tpu_custom_call.1} parent=1 // pred_fallthru
      _
    // Predicated region
    $region38: #{tpu_custom_call.1} parent=1 // pred_check
      _
    $region39: #{tpu_custom_call.1} parent=1 // pred_check_branch
      %43 = sbr.rel (0) target = $region41
    $region40: #{tpu_custom_call.1} parent=1 // pred_region
      _
    $region41: #{tpu_custom_call.1} parent=1 // pred_fallthru
      _
    // Predicated region
    $region42: #{tpu_custom_call.1} parent=1 // pred_check
      _
    $region43: #{tpu_custom_call.1} parent=1 // pred_check_branch
      %45 = sbr.rel (0) target = $region45
    $region44: #{tpu_custom_call.1} parent=1 // pred_region
      _
    $region45: #{tpu_custom_call.1} parent=1 // pred_fallthru
      _
    // Predicated region
    $region46: #{tpu_custom_call.1} parent=1 // pred_check
      _
    $region47: #{tpu_custom_call.1} parent=1 // pred_check_branch
      %47 = sbr.rel (0) target = $region49
    $region48: #{tpu_custom_call.1} parent=1 // pred_region
      _
    $region49: #{tpu_custom_call.1} parent=1 // pred_fallthru
      _
    // Predicated region
    $region50: #{tpu_custom_call.1} parent=1 // pred_check
      _
    $region51: #{tpu_custom_call.1} parent=1 // pred_check_branch
      %49 = sbr.rel (0) target = $region53
    $region52: #{tpu_custom_call.1} parent=1 // pred_region
      _
    $region53: #{tpu_custom_call.1} parent=1 // pred_fallthru
      _
    // Predicated region
    $region54: #{tpu_custom_call.1} parent=1 // pred_check
      _
    $region55: #{tpu_custom_call.1} parent=1 // pred_check_branch
      %51 = sbr.rel (0) target = $region57
    $region56: #{tpu_custom_call.1} parent=1 // pred_region
      _
    $region57: #{tpu_custom_call.1} parent=1 // pred_fallthru
      _
    // Predicated region
    $region58: #{tpu_custom_call.1} parent=1 // pred_check
      _
    $region59: #{tpu_custom_call.1} parent=1 // pred_check_branch
      %53 = sbr.rel (0) target = $region61
    $region60: #{tpu_custom_call.1} parent=1 // pred_region
      _
    $region61: #{tpu_custom_call.1} parent=1 // pred_fallthru
      _
    // Predicated region
    $region62: #{tpu_custom_call.1} parent=1 // pred_check
      _
    $region63: #{tpu_custom_call.1} parent=1 // pred_check_branch
      %55 = sbr.rel (0) target = $region65
    $region64: #{tpu_custom_call.1} parent=1 // pred_region
      _
    $region65: #{tpu_custom_call.1} parent=1 // pred_fallthru
      _
    // Predicated region
    $region66: #{tpu_custom_call.1} parent=1 // pred_check
      _
    $region67: #{tpu_custom_call.1} parent=1 // pred_check_branch
      %57 = sbr.rel (0) target = $region69
    $region68: #{tpu_custom_call.1} parent=1 // pred_region
      _
    $region69: #{tpu_custom_call.1} parent=1 // pred_fallthru
      _
    // Predicated region
    $region70: #{tpu_custom_call.1} parent=1 // pred_check
      _
    $region71: #{tpu_custom_call.1} parent=1 // pred_check_branch
      %59 = sbr.rel (0) target = $region73
    $region72: #{tpu_custom_call.1} parent=1 // pred_region
      _
    $region73: #{tpu_custom_call.1} parent=1 // pred_fallthru
      _
    %v60 = vld [vmem:[%s0] sm:$0xff]
    %v61 = vld [vmem:[%s0 + $0x8] sm:$0xff]
    %v62 = vld [vmem:[%s1] sm:$0xff]
    %v63 = vld [vmem:[%s1 + $0x8] sm:$0xff]
    %v64 = vld [vmem:[%s1 + $0x10] sm:$0xff]
    %v65 = vld [vmem:[%s1 + $0x18] sm:$0xff]
    %v66 = vld [vmem:[%s1 + $0x20] sm:$0xff]
    %v67 = vld [vmem:[%s1 + $0x28] sm:$0xff]
    %v68 = vld [vmem:[%s1 + $0x30] sm:$0xff]
    %v69 = vld [vmem:[%s1 + $0x38] sm:$0xff]
    %v70 = vld [vmem:[%s1 + $0x40] sm:$0xff]
    %v71 = vld [vmem:[%s1 + $0x48] sm:$0xff]
    %v72 = vld [vmem:[%s1 + $0x50] sm:$0xff]
    %v73 = vld [vmem:[%s1 + $0x58] sm:$0xff]
    %v74 = vld [vmem:[%s1 + $0x60] sm:$0xff]
    %v75 = vld [vmem:[%s1 + $0x68] sm:$0xff]
    %v76 = vld [vmem:[%s1 + $0x70] sm:$0xff]
    %v77 = vld [vmem:[%s1 + $0x78] sm:$0xff]
    %v78 = vld [vmem:[%s1 + $0x80] sm:$0xff]
    %v79 = vld [vmem:[%s1 + $0x88] sm:$0xff]
    %v80 = vld [vmem:[%s1 + $0x90] sm:$0xff]
    %v81 = vld [vmem:[%s1 + $0x98] sm:$0xff]
    %v82 = vld [vmem:[%s1 + $0xa0] sm:$0xff]
    %v83 = vld [vmem:[%s1 + $0xa8] sm:$0xff]
    %v84 = vld [vmem:[%s1 + $0xb0] sm:$0xff]
    %v85 = vld [vmem:[%s1 + $0xb8] sm:$0xff]
    %v86 = vld [vmem:[%s1 + $0xc0] sm:$0xff]
    %v87 = vld [vmem:[%s1 + $0xc8] sm:$0xff]
    %v88 = vld [vmem:[%s1 + $0xd0] sm:$0xff]
    %v89 = vld [vmem:[%s1 + $0xd8] sm:$0xff]
    %v90 = vld [vmem:[%s1 + $0xe0] sm:$0xff]
    %v91 = vld [vmem:[%s1 + $0xe8] sm:$0xff]
    %v92 = vld [vmem:[%s1 + $0xf0] sm:$0xff]
    %v93 = vld [vmem:[%s1 + $0xf8] sm:$0xff]
    %v94 = vld [vmem:[%s2] sm:$0xff]
    %v95 = vld [vmem:[%s2 + $0x8] sm:$0xff]
    %v96 = vld [vmem:[%s3] sm:$0x1]
    %v97 = vld [vmem:[%s4] sm:$0x1]
    %v98 = vld [vmem:[%s5] sm:$0xff]
    %v99 = vld [vmem:[%s5 + $0x8] sm:$0xff]
    %v100 = vld [vmem:[%s5 + $0x10] sm:$0xff]
    %v101 = vld [vmem:[%s5 + $0x18] sm:$0xff]
    %v102 = vld [vmem:[%s5 + $0x20] sm:$0xff]
    %v103 = vld [vmem:[%s5 + $0x28] sm:$0xff]
    %v104 = vld [vmem:[%s5 + $0x30] sm:$0xff]
    %v105 = vld [vmem:[%s5 + $0x38] sm:$0xff]
    %v106 = vld [vmem:[%s6] sm:$0xff]
    %v107 = vld [vmem:[%s6 + $0x8] sm:$0xff]
    %v108 = vld [vmem:[%s6 + $0x10] sm:$0xff]
    %v109 = vld [vmem:[%s6 + $0x18] sm:$0xff]
    %v110 = vld [vmem:[%s6 + $0x20] sm:$0xff]
    %v111 = vld [vmem:[%s6 + $0x28] sm:$0xff]
    %v112 = vld [vmem:[%s6 + $0x30] sm:$0xff]
    %v113 = vld [vmem:[%s6 + $0x38] sm:$0xff]
    %v114 = vld [vmem:[%s7] sm:$0xff]
    %v115 = vld [vmem:[%s7 + $0x8] sm:$0xff]
    %v116 = vld [vmem:[%s7 + $0x10] sm:$0xff]
    %v117 = vld [vmem:[%s7 + $0x18] sm:$0xff]
    %v118 = vld [vmem:[%s7 + $0x20] sm:$0xff]
    %v119 = vld [vmem:[%s7 + $0x28] sm:$0xff]
    %v120 = vld [vmem:[%s7 + $0x30] sm:$0xff]
    %v121 = vld [vmem:[%s7 + $0x38] sm:$0xff]
    %v122 = vld [vmem:[%s8] sm:$0xff]
    %v123 = vld [vmem:[%s8 + $0x8] sm:$0xff]
    %v124 = vld [vmem:[%s8 + $0x10] sm:$0xff]
    %v125 = vld [vmem:[%s8 + $0x18] sm:$0xff]
    %v126 = vld [vmem:[%s8 + $0x20] sm:$0xff]
    %v127 = vld [vmem:[%s8 + $0x28] sm:$0xff]
    %v128 = vld [vmem:[%s8 + $0x30] sm:$0xff]
    %v129 = vld [vmem:[%s8 + $0x38] sm:$0xff]
    %v130 = vld [vmem:[%s8 + $0x40] sm:$0xff]
    %v131 = vld [vmem:[%s8 + $0x48] sm:$0xff]
    %v132 = vld [vmem:[%s8 + $0x50] sm:$0xff]
    %v133 = vld [vmem:[%s8 + $0x58] sm:$0xff]
    %v134 = vld [vmem:[%s8 + $0x60] sm:$0xff]
    %v135 = vld [vmem:[%s8 + $0x68] sm:$0xff]
    %v136 = vld [vmem:[%s8 + $0x70] sm:$0xff]
    %v137 = vld [vmem:[%s8 + $0x78] sm:$0xff]
    %v138 = vld [vmem:[%s8 + $0x80] sm:$0xff]
    %v139 = vld [vmem:[%s8 + $0x88] sm:$0xff]
    %v140 = vld [vmem:[%s8 + $0x90] sm:$0xff]
    %v141 = vld [vmem:[%s8 + $0x98] sm:$0xff]
    %v142 = vld [vmem:[%s8 + $0xa0] sm:$0xff]
    %v143 = vld [vmem:[%s8 + $0xa8] sm:$0xff]
    %v144 = vld [vmem:[%s8 + $0xb0] sm:$0xff]
    %v145 = vld [vmem:[%s8 + $0xb8] sm:$0xff]
    %v146 = vld [vmem:[%s8 + $0xc0] sm:$0xff]
    %v147 = vld [vmem:[%s8 + $0xc8] sm:$0xff]
    %v148 = vld [vmem:[%s8 + $0xd0] sm:$0xff]
    %v149 = vld [vmem:[%s8 + $0xd8] sm:$0xff]
    %v150 = vld [vmem:[%s8 + $0xe0] sm:$0xff]
    %v151 = vld [vmem:[%s8 + $0xe8] sm:$0xff]
    %v152 = vld [vmem:[%s8 + $0xf0] sm:$0xff]
    %v153 = vld [vmem:[%s8 + $0xf8] sm:$0xff]
    %v154 = vld [vmem:[%s9] sm:$0x1]
    %v155 = vld [vmem:[%s10] sm:$0x1]
    %v156 = vld [vmem:[%s11] sm:$0x1]
    %v157 = vld [vmem:[%s12] sm:$0xff]
    %v158 = vld [vmem:[%s12 + $0x8] sm:$0xff]
    %v159 = vld [vmem:[%s12 + $0x10] sm:$0xff]
    %v160 = vld [vmem:[%s12 + $0x18] sm:$0xff]
    %v161 = vld [vmem:[%s13] sm:$0x1]
    %v162 = vld [vmem:[%s14] sm:$0xff]
    %v163 = vld [vmem:[%s14 + $0x8] sm:$0xff]
    %v164 = vld [vmem:[%s14 + $0x10] sm:$0xff]
    %v165 = vld [vmem:[%s14 + $0x18] sm:$0xff]
    %v166 = vld [vmem:[%s14 + $0x20] sm:$0xff]
    %v167 = vld [vmem:[%s14 + $0x28] sm:$0xff]
    %v168 = vld [vmem:[%s14 + $0x30] sm:$0xff]
    %v169 = vld [vmem:[%s14 + $0x38] sm:$0xff]
    %v170 = vld [vmem:[%s15] sm:$0x1]
    %vm171 = vcmask 261120
    %v172 = vsel %vm171, %v60, 0.0
    %173 = vadd.xlane.f32.xlu0 %v172
    %v174 = vpop.xlane.xlu0 %173
    %v175 = vsel %vm171, %v61, 0.0
    %176 = vadd.xlane.f32.xlu0 %v175
    %v177 = vpop.xlane.xlu0 %176
    %v178 = vrcp.pop 32.0
    %v179 = vmul.f32 %v174, %v178
    %v180 = vmul.f32 %v177, %v178
    %v181 = vsub.f32 %v60, %v179
    %v182 = vsub.f32 %v61, %v180
    %v183 = vmul.f32 %v181, %v181
    %v184 = vmul.f32 %v182, %v182
    %v185 = vsel %vm171, %v183, 0.0
    %186 = vadd.xlane.f32.xlu0 %v185
    %v187 = vpop.xlane.xlu0 %186
    %v188 = vsel %vm171, %v184, 0.0
    %189 = vadd.xlane.f32.xlu0 %v188
    %v190 = vpop.xlane.xlu0 %189
    %v191 = vmul.f32 %v187, %v178
    %v192 = vmul.f32 %v190, %v178
    %v193 = vadd.f32 %v191, 1e-06
    %v194 = vadd.f32 %v192, 1e-06
    %v195 = vrsqrt.pop %v193
    %v196 = vrsqrt.pop %v194
    %v197 = vmul.f32 %v181, %v195
    %v198 = vmul.f32 %v182, %v196
    %v200 = vlaneseq
    %v201 = vshrl.u32 %v200, 7
    %v202 = vsub.s32 0, %v201
    %v203 = vrot.slane %v96, %v202
    %v205 = vmul.f32 %v197, %v203
    %v206 = vmul.f32 %v198, %v203
    %v208 = vlaneseq
    %v209 = vshrl.u32 %v208, 7
    %v210 = vsub.s32 0, %v209
    %v211 = vrot.slane %v97, %v210
    %v213 = vadd.f32 %v205, %v211
    %v214 = vadd.f32 %v206, %v211
    %v216 = vsel %vm171, %v213, 0
    %v219 = vsel %vm171, %v214, 0
    %221 = vmatprep.subr.mxu0 0.0
    %222 = vmatpush1.msra.mxu0 0.0
    %223 = vmatprep.subr.mxu0 0.0
    %224 = vmatpush1.msra.mxu0 0.0
    %225 = vmatprep.subr.mxu0 0.0
    %226 = vmatpush1.msra.mxu0 0.0
    %227 = vmatprep.subr.mxu0 0.0
    %228 = vmatpush1.msra.mxu0 0.0
    %229 = vmatprep.subr.mxu0 0.0
    %230 = vmatpush1.msra.mxu0 0.0
    %231 = vmatprep.subr.mxu0 0.0
    %232 = vmatpush1.msra.mxu0 0.0
    %233 = vmatprep.subr.mxu0 0.0
    %234 = vmatpush1.msra.mxu0 0.0
    %235 = vmatprep.subr.mxu0 0.0
    %236 = vmatpush1.msra.mxu0 0.0
    %237 = vmatprep.subr.mxu0 0.0
    %238 = vmatpush1.msra.mxu0 0.0
    %239 = vmatprep.subr.mxu0 0.0
    %240 = vmatpush1.msra.mxu0 0.0
    %241 = vmatprep.subr.mxu0 0.0
    %242 = vmatpush1.msra.mxu0 0.0
    %243 = vmatprep.subr.mxu0 0.0
    %244 = vmatpush1.msra.mxu0 0.0
    %245 = vmatprep.subr.mxu0 %v113
    %246 = vmatpush1.msra.mxu0 %v112
    %247 = vmatprep.subr.mxu0 %v111
    %248 = vmatpush1.msra.mxu0 %v110
    %249 = vmatprep.subr.mxu0 %v109
    %250 = vmatpush1.msra.mxu0 %v108
    %251 = vmatprep.subr.mxu0 %v107
    %252 = vmatpush1.msra.mxu0 %v106
    %253 = vmatprep.subr.mxu0 0.0
    %254 = vmatpush2.msra.mxu0 0.0
    %255 = vmatprep.subr.mxu0 0.0
    %256 = vmatpush2.msra.mxu0 0.0
    %257 = vmatprep.subr.mxu0 0.0
    %258 = vmatpush2.msra.mxu0 0.0
    %259 = vmatprep.subr.mxu0 0.0
    %260 = vmatpush2.msra.mxu0 0.0
    %261 = vmatprep.subr.mxu0 0.0
    %262 = vmatpush2.msra.mxu0 0.0
    %263 = vmatprep.subr.mxu0 0.0
    %264 = vmatpush2.msra.mxu0 0.0
    %265 = vmatprep.subr.mxu0 0.0
    %266 = vmatpush2.msra.mxu0 0.0
    %267 = vmatprep.subr.mxu0 0.0
    %268 = vmatpush2.msra.mxu0 0.0
    %269 = vmatprep.subr.mxu0 0.0
    %270 = vmatpush2.msra.mxu0 0.0
    %271 = vmatprep.subr.mxu0 0.0
    %272 = vmatpush2.msra.mxu0 0.0
    %273 = vmatprep.subr.mxu0 0.0
    %274 = vmatpush2.msra.mxu0 0.0
    %275 = vmatprep.subr.mxu0 0.0
    %276 = vmatpush2.msra.mxu0 0.0
    %277 = vmatprep.subr.mxu0 0.0
    %278 = vmatpush2.msra.mxu0 0.0
    %279 = vmatprep.subr.mxu0 0.0
    %280 = vmatpush2.msra.mxu0 0.0
    %281 = vmatprep.subr.mxu0 0.0
    %282 = vmatpush2.msra.mxu0 0.0
    %283 = vmatprep.subr.mxu0 0.0
    %284 = vmatpush2.msra.mxu0 0.0
    %285 = vmatprep.mubr.f32.mxu0 0.0
    %286 = vmatmul.mubr.f32.gmra.mxu0 %v216
    %v287 = vpop.f32.mrf.mxu0
    %v288 = vadd.f32 0.0, %v287
    %v289 = vpop.f32.mrf.mxu0
    %v290 = vadd.f32 0.0, %v289
    %291 = vmatprep.mubr.f32.mxu0 0.0
    %292 = vmatmul.mubr.f32.gmra.mxu0 %v219
    %v293 = vpop.f32.mrf.mxu0
    %v294 = vadd.f32 0.0, %v293
    %v295 = vpop.f32.mrf.mxu0
    %v296 = vadd.f32 0.0, %v295
    %297 = vdwg.mxu0
    %298 = vmatprep.subr.mxu0 0.0
    %299 = vmatpush1.msra.mxu0 0.0
    %300 = vmatprep.subr.mxu0 0.0
    %301 = vmatpush1.msra.mxu0 0.0
    %302 = vmatprep.subr.mxu0 0.0
    %303 = vmatpush1.msra.mxu0 0.0
    %304 = vmatprep.subr.mxu0 0.0
    %305 = vmatpush1.msra.mxu0 0.0
    %306 = vmatprep.subr.mxu0 0.0
    %307 = vmatpush1.msra.mxu0 0.0
    %308 = vmatprep.subr.mxu0 0.0
    %309 = vmatpush1.msra.mxu0 0.0
    %310 = vmatprep.subr.mxu0 0.0
    %311 = vmatpush1.msra.mxu0 0.0
    %312 = vmatprep.subr.mxu0 0.0
    %313 = vmatpush1.msra.mxu0 0.0
    %314 = vmatprep.subr.mxu0 0.0
    %315 = vmatpush1.msra.mxu0 0.0
    %316 = vmatprep.subr.mxu0 0.0
    %317 = vmatpush1.msra.mxu0 0.0
    %318 = vmatprep.subr.mxu0 0.0
    %319 = vmatpush1.msra.mxu0 0.0
    %320 = vmatprep.subr.mxu0 0.0
    %321 = vmatpush1.msra.mxu0 0.0
    %322 = vmatprep.subr.mxu0 %v121
    %323 = vmatpush1.msra.mxu0 %v120
    %324 = vmatprep.subr.mxu0 %v119
    %325 = vmatpush1.msra.mxu0 %v118
    %326 = vmatprep.subr.mxu0 %v117
    %327 = vmatpush1.msra.mxu0 %v116
    %328 = vmatprep.subr.mxu0 %v115
    %329 = vmatpush1.msra.mxu0 %v114
    %330 = vmatprep.subr.mxu0 0.0
    %331 = vmatpush2.msra.mxu0 0.0
    %332 = vmatprep.subr.mxu0 0.0
    %333 = vmatpush2.msra.mxu0 0.0
    %334 = vmatprep.subr.mxu0 0.0
    %335 = vmatpush2.msra.mxu0 0.0
    %336 = vmatprep.subr.mxu0 0.0
    %337 = vmatpush2.msra.mxu0 0.0
    %338 = vmatprep.subr.mxu0 0.0
    %339 = vmatpush2.msra.mxu0 0.0
    %340 = vmatprep.subr.mxu0 0.0
    %341 = vmatpush2.msra.mxu0 0.0
    %342 = vmatprep.subr.mxu0 0.0
    %343 = vmatpush2.msra.mxu0 0.0
    %344 = vmatprep.subr.mxu0 0.0
    %345 = vmatpush2.msra.mxu0 0.0
    %346 = vmatprep.subr.mxu0 0.0
    %347 = vmatpush2.msra.mxu0 0.0
    %348 = vmatprep.subr.mxu0 0.0
    %349 = vmatpush2.msra.mxu0 0.0
    %350 = vmatprep.subr.mxu0 0.0
    %351 = vmatpush2.msra.mxu0 0.0
    %352 = vmatprep.subr.mxu0 0.0
    %353 = vmatpush2.msra.mxu0 0.0
    %354 = vmatprep.subr.mxu0 0.0
    %355 = vmatpush2.msra.mxu0 0.0
    %356 = vmatprep.subr.mxu0 0.0
    %357 = vmatpush2.msra.mxu0 0.0
    %358 = vmatprep.subr.mxu0 0.0
    %359 = vmatpush2.msra.mxu0 0.0
    %360 = vmatprep.subr.mxu0 0.0
    %361 = vmatpush2.msra.mxu0 0.0
    %362 = vmatprep.mubr.f32.mxu0 0.0
    %363 = vmatmul.mubr.f32.gmra.mxu0 %v216
    %v364 = vpop.f32.mrf.mxu0
    %v365 = vadd.f32 0.0, %v364
    %v366 = vpop.f32.mrf.mxu0
    %v367 = vadd.f32 0.0, %v366
    %368 = vmatprep.mubr.f32.mxu0 0.0
    %369 = vmatmul.mubr.f32.gmra.mxu0 %v219
    %v370 = vpop.f32.mrf.mxu0
    %v371 = vadd.f32 0.0, %v370
    %v372 = vpop.f32.mrf.mxu0
    %v373 = vadd.f32 0.0, %v372
    %374 = vdwg.mxu0
    %v375 = vrot.slane %v214, 7
    %vm376 = vcmask 1041409
    %v377 = vsel %vm376, %v375, %v213
    %v378 = vsel %vm171, %v377, 0
    %380 = vmatprep.subr.mxu0 0.0
    %381 = vmatpush1.msra.mxu0 0.0
    %382 = vmatprep.subr.mxu0 0.0
    %383 = vmatpush1.msra.mxu0 0.0
    %384 = vmatprep.subr.mxu0 0.0
    %385 = vmatpush1.msra.mxu0 0.0
    %386 = vmatprep.subr.mxu0 0.0
    %387 = vmatpush1.msra.mxu0 0.0
    %388 = vmatprep.subr.mxu0 0.0
    %389 = vmatpush1.msra.mxu0 0.0
    %390 = vmatprep.subr.mxu0 0.0
    %391 = vmatpush1.msra.mxu0 0.0
    %392 = vmatprep.subr.mxu0 0.0
    %393 = vmatpush1.msra.mxu0 0.0
    %394 = vmatprep.subr.mxu0 0.0
    %395 = vmatpush1.msra.mxu0 0.0
    %396 = vmatprep.subr.mxu0 0.0
    %397 = vmatpush1.msra.mxu0 0.0
    %398 = vmatprep.subr.mxu0 0.0
    %399 = vmatpush1.msra.mxu0 0.0
    %400 = vmatprep.subr.mxu0 0.0
    %401 = vmatpush1.msra.mxu0 0.0
    %402 = vmatprep.subr.mxu0 0.0
    %403 = vmatpush1.msra.mxu0 0.0
    %404 = vmatprep.subr.mxu0 %v105
    %405 = vmatpush1.msra.mxu0 %v104
    %406 = vmatprep.subr.mxu0 %v103
    %407 = vmatpush1.msra.mxu0 %v102
    %408 = vmatprep.subr.mxu0 %v101
    %409 = vmatpush1.msra.mxu0 %v100
    %410 = vmatprep.subr.mxu0 %v99
    %411 = vmatpush1.msra.mxu0 %v98
    %412 = vmatprep.subr.mxu0 0.0
    %413 = vmatpush2.msra.mxu0 0.0
    %414 = vmatprep.subr.mxu0 0.0
    %415 = vmatpush2.msra.mxu0 0.0
    %416 = vmatprep.subr.mxu0 0.0
    %417 = vmatpush2.msra.mxu0 0.0
    %418 = vmatprep.subr.mxu0 0.0
    %419 = vmatpush2.msra.mxu0 0.0
    %420 = vmatprep.subr.mxu0 0.0
    %421 = vmatpush2.msra.mxu0 0.0
    %422 = vmatprep.subr.mxu0 0.0
    %423 = vmatpush2.msra.mxu0 0.0
    %424 = vmatprep.subr.mxu0 0.0
    %425 = vmatpush2.msra.mxu0 0.0
    %426 = vmatprep.subr.mxu0 0.0
    %427 = vmatpush2.msra.mxu0 0.0
    %428 = vmatprep.subr.mxu0 0.0
    %429 = vmatpush2.msra.mxu0 0.0
    %430 = vmatprep.subr.mxu0 0.0
    %431 = vmatpush2.msra.mxu0 0.0
    %432 = vmatprep.subr.mxu0 0.0
    %433 = vmatpush2.msra.mxu0 0.0
    %434 = vmatprep.subr.mxu0 0.0
    %435 = vmatpush2.msra.mxu0 0.0
    %436 = vmatprep.subr.mxu0 0.0
    %437 = vmatpush2.msra.mxu0 0.0
    %438 = vmatprep.subr.mxu0 0.0
    %439 = vmatpush2.msra.mxu0 0.0
    %440 = vmatprep.subr.mxu0 0.0
    %441 = vmatpush2.msra.mxu0 0.0
    %442 = vmatprep.subr.mxu0 0.0
    %443 = vmatpush2.msra.mxu0 0.0
    %444 = vmatprep.mubr.f32.mxu0 0.0
    %445 = vmatmul.mubr.f32.gmra.mxu0 %v378
    %v446 = vpop.f32.mrf.mxu0
    %v447 = vadd.f32 0.0, %v446
    %v448 = vpop.f32.mrf.mxu0
    %v449 = vadd.f32 0.0, %v448
    %450 = vdwg.mxu0
    %v453 = vcombine.low %v447, %v449
    %v455 = vunpack.c.l.s4 1966171168
    %v456 = vunpack.c.0.s8 %v455
    %v457 = vlaneseq
    %v458 = vshrl.u32 %v457, 7
    %v459 = vsub.s32 %v456, %v458
    %v460 = vrot.slane %v453, %v459
    %v461 = vcombine.high %v460, %v460
    %v463 = vunpack.c.l.s4 1966171168
    %v464 = vunpack.c.0.s8 %v463
    %v465 = vlaneseq
    %v466 = vshrl.u32 %v465, 7
    %v467 = vsub.s32 %v464, %v466
    %v468 = vrot.slane %v460, %v467
    %v470 = vunpack.c.l.s4 1966171168
    %v471 = vunpack.c.0.s8 %v470
    %v472 = vlaneseq
    %v473 = vshrl.u32 %v472, 7
    %v474 = vsub.s32 %v471, %v473
    %v475 = vrot.slane %v461, %v474
    %v476 = vlaneseq
    %v477 = vshrl.u32 %v476, 7
    %v478 = vsub.s32 0, %v477
    %v479 = vrot.slane %v468, %v478
    %v480 = vlaneseq
    %v481 = vshrl.u32 %v480, 7
    %v482 = vsub.s32 1, %v481
    %v483 = vrot.slane %v468, %v482
    %v484 = vlaneseq
    %v485 = vshrl.u32 %v484, 7
    %v486 = vsub.s32 0, %v485
    %v487 = vrot.slane %v475, %v486
    %v488 = vlaneseq
    %v489 = vshrl.u32 %v488, 7
    %v490 = vsub.s32 1, %v489
    %v491 = vrot.slane %v475, %v490
    %v496 = vmul.f32 %v288, %v479
    %v497 = vmul.f32 %v290, %v483
    %v498 = vmul.f32 %v294, %v487
    %v499 = vmul.f32 %v296, %v491
    %500 = vmatprep.subr.mxu0 0.0
    %501 = vmatpush1.msra.mxu0 %v77
    %502 = vmatprep.subr.mxu0 0.0
    %503 = vmatpush1.msra.mxu0 %v76
    %504 = vmatprep.subr.mxu0 0.0
    %505 = vmatpush1.msra.mxu0 %v75
    %506 = vmatprep.subr.mxu0 0.0
    %507 = vmatpush1.msra.mxu0 %v74
    %508 = vmatprep.subr.mxu0 0.0
    %509 = vmatpush1.msra.mxu0 %v73
    %510 = vmatprep.subr.mxu0 0.0
    %511 = vmatpush1.msra.mxu0 %v72
    %512 = vmatprep.subr.mxu0 0.0
    %513 = vmatpush1.msra.mxu0 %v71
    %514 = vmatprep.subr.mxu0 0.0
    %515 = vmatpush1.msra.mxu0 %v70
    %516 = vmatprep.subr.mxu0 0.0
    %517 = vmatpush1.msra.mxu0 %v69
    %518 = vmatprep.subr.mxu0 0.0
    %519 = vmatpush1.msra.mxu0 %v68
    %520 = vmatprep.subr.mxu0 0.0
    %521 = vmatpush1.msra.mxu0 %v67
    %522 = vmatprep.subr.mxu0 0.0
    %523 = vmatpush1.msra.mxu0 %v66
    %524 = vmatprep.subr.mxu0 0.0
    %525 = vmatpush1.msra.mxu0 %v65
    %526 = vmatprep.subr.mxu0 0.0
    %527 = vmatpush1.msra.mxu0 %v64
    %528 = vmatprep.subr.mxu0 0.0
    %529 = vmatpush1.msra.mxu0 %v63
    %530 = vmatprep.subr.mxu0 0.0
    %531 = vmatpush1.msra.mxu0 %v62
    %532 = vmatprep.subr.mxu0 0.0
    %533 = vmatpush2.msra.mxu0 %v93
    %534 = vmatprep.subr.mxu0 0.0
    %535 = vmatpush2.msra.mxu0 %v92
    %536 = vmatprep.subr.mxu0 0.0
    %537 = vmatpush2.msra.mxu0 %v91
    %538 = vmatprep.subr.mxu0 0.0
    %539 = vmatpush2.msra.mxu0 %v90
    %540 = vmatprep.subr.mxu0 0.0
    %541 = vmatpush2.msra.mxu0 %v89
    %542 = vmatprep.subr.mxu0 0.0
    %543 = vmatpush2.msra.mxu0 %v88
    %544 = vmatprep.subr.mxu0 0.0
    %545 = vmatpush2.msra.mxu0 %v87
    %546 = vmatprep.subr.mxu0 0.0
    %547 = vmatpush2.msra.mxu0 %v86
    %548 = vmatprep.subr.mxu0 0.0
    %549 = vmatpush2.msra.mxu0 %v85
    %550 = vmatprep.subr.mxu0 0.0
    %551 = vmatpush2.msra.mxu0 %v84
    %552 = vmatprep.subr.mxu0 0.0
    %553 = vmatpush2.msra.mxu0 %v83
    %554 = vmatprep.subr.mxu0 0.0
    %555 = vmatpush2.msra.mxu0 %v82
    %556 = vmatprep.subr.mxu0 0.0
    %557 = vmatpush2.msra.mxu0 %v81
    %558 = vmatprep.subr.mxu0 0.0
    %559 = vmatpush2.msra.mxu0 %v80
    %560 = vmatprep.subr.mxu0 0.0
    %561 = vmatpush2.msra.mxu0 %v79
    %562 = vmatprep.subr.mxu0 0.0
    %563 = vmatpush2.msra.mxu0 %v78
    %564 = vmatprep.mubr.f32.mxu0 %v497
    %565 = vmatmul.mubr.f32.gmra.mxu0 %v496
    %v566 = vpop.f32.mrf.mxu0
    %v567 = vadd.f32 0.0, %v566
    %v568 = vpop.f32.mrf.mxu0
    %569 = vmatprep.mubr.f32.mxu0 %v499
    %570 = vmatmul.mubr.f32.gmra.mxu0 %v498
    %v571 = vpop.f32.mrf.mxu0
    %v572 = vadd.f32 0.0, %v571
    %v573 = vpop.f32.mrf.mxu0
    %574 = vdwg.mxu0
    %v575 = vmul.f32 %v567, 0.5
    %v576 = vmul.f32 %v572, 0.5
    %vm577 = vcmask 64512
    %v578 = vsel %vm577, %v575, -inf
    %v579 = vrot.slane %v578, 4
    %v580 = vmax.f32 %v578, %v579
    %v581 = vrot.slane %v580, 2
    %v582 = vmax.f32 %v580, %v581
    %v583 = vrot.slane %v582, 1
    %v584 = vmax.f32 %v582, %v583
    %v585 = vsel %vm577, %v576, -inf
    %v586 = vrot.slane %v585, 4
    %v587 = vmax.f32 %v585, %v586
    %v588 = vrot.slane %v587, 2
    %v589 = vmax.f32 %v587, %v588
    %v590 = vrot.slane %v589, 1
    %v591 = vmax.f32 %v589, %v590
    %v592 = vsub.f32 %v575, %v584
    %v593 = vsub.f32 %v576, %v591
    %v594 = vmul.f32 %v592, 1.442695
    %v595 = vpow.pop %v594
    %v596 = vmul.f32 %v593, 1.442695
    %v597 = vpow.pop %v596
    %v598 = vsel %vm577, %v595, 0.0
    %v599 = vrot.slane %v598, 4
    %v600 = vadd.f32 %v598, %v599
    %v601 = vrot.slane %v600, 2
    %v602 = vadd.f32 %v600, %v601
    %v603 = vrot.slane %v602, 1
    %v604 = vadd.f32 %v602, %v603
    %v605 = vsel %vm577, %v597, 0.0
    %v606 = vrot.slane %v605, 4
    %v607 = vadd.f32 %v605, %v606
    %v608 = vrot.slane %v607, 2
    %v609 = vadd.f32 %v607, %v608
    %v610 = vrot.slane %v609, 1
    %v611 = vadd.f32 %v609, %v610
    %v612 = vrcp.pop %v604
    %v613 = vmul.f32 %v595, %v612
    %v614 = vrcp.pop %v611
    %v615 = vmul.f32 %v597, %v614
    %v617 = vsel %vm577, %v613, 0
    %v620 = vsel %vm577, %v615, 0
    %622 = vmatprep.subr.mxu0 0.0
    %623 = vmatpush1.msra.mxu0 0.0
    %624 = vmatprep.subr.mxu0 0.0
    %625 = vmatpush1.msra.mxu0 0.0
    %626 = vmatprep.subr.mxu0 0.0
    %627 = vmatpush1.msra.mxu0 0.0
    %628 = vmatprep.subr.mxu0 0.0
    %629 = vmatpush1.msra.mxu0 0.0
    %630 = vmatprep.subr.mxu0 0.0
    %631 = vmatpush1.msra.mxu0 0.0
    %632 = vmatprep.subr.mxu0 0.0
    %633 = vmatpush1.msra.mxu0 0.0
    %634 = vmatprep.subr.mxu0 0.0
    %635 = vmatpush1.msra.mxu0 0.0
    %636 = vmatprep.subr.mxu0 0.0
    %637 = vmatpush1.msra.mxu0 0.0
    %638 = vmatprep.subr.mxu0 0.0
    %639 = vmatpush1.msra.mxu0 0.0
    %640 = vmatprep.subr.mxu0 0.0
    %641 = vmatpush1.msra.mxu0 0.0
    %642 = vmatprep.subr.mxu0 0.0
    %643 = vmatpush1.msra.mxu0 0.0
    %644 = vmatprep.subr.mxu0 0.0
    %645 = vmatpush1.msra.mxu0 0.0
    %646 = vmatprep.subr.mxu0 0.0
    %647 = vmatpush1.msra.mxu0 0.0
    %648 = vmatprep.subr.mxu0 0.0
    %649 = vmatpush1.msra.mxu0 0.0
    %650 = vmatprep.subr.mxu0 0.0
    %651 = vmatpush1.msra.mxu0 0.0
    %652 = vmatprep.subr.mxu0 %v95
    %653 = vmatpush1.msra.mxu0 %v94
    %654 = vmatprep.subr.mxu0 0.0
    %655 = vmatpush2.msra.mxu0 0.0
    %656 = vmatprep.subr.mxu0 0.0
    %657 = vmatpush2.msra.mxu0 0.0
    %658 = vmatprep.subr.mxu0 0.0
    %659 = vmatpush2.msra.mxu0 0.0
    %660 = vmatprep.subr.mxu0 0.0
    %661 = vmatpush2.msra.mxu0 0.0
    %662 = vmatprep.subr.mxu0 0.0
    %663 = vmatpush2.msra.mxu0 0.0
    %664 = vmatprep.subr.mxu0 0.0
    %665 = vmatpush2.msra.mxu0 0.0
    %666 = vmatprep.subr.mxu0 0.0
    %667 = vmatpush2.msra.mxu0 0.0
    %668 = vmatprep.subr.mxu0 0.0
    %669 = vmatpush2.msra.mxu0 0.0
    %670 = vmatprep.subr.mxu0 0.0
    %671 = vmatpush2.msra.mxu0 0.0
    %672 = vmatprep.subr.mxu0 0.0
    %673 = vmatpush2.msra.mxu0 0.0
    %674 = vmatprep.subr.mxu0 0.0
    %675 = vmatpush2.msra.mxu0 0.0
    %676 = vmatprep.subr.mxu0 0.0
    %677 = vmatpush2.msra.mxu0 0.0
    %678 = vmatprep.subr.mxu0 0.0
    %679 = vmatpush2.msra.mxu0 0.0
    %680 = vmatprep.subr.mxu0 0.0
    %681 = vmatpush2.msra.mxu0 0.0
    %682 = vmatprep.subr.mxu0 0.0
    %683 = vmatpush2.msra.mxu0 0.0
    %684 = vmatprep.subr.mxu0 0.0
    %685 = vmatpush2.msra.mxu0 0.0
    %686 = vmatprep.mubr.f32.mxu0 0.0
    %687 = vmatmul.mubr.f32.gmra.mxu0 %v617
    %v688 = vpop.f32.mrf.mxu0
    %v689 = vadd.f32 0.0, %v688
    %v690 = vpop.f32.mrf.mxu0
    %v691 = vadd.f32 0.0, %v690
    %692 = vmatprep.mubr.f32.mxu0 0.0
    %693 = vmatmul.mubr.f32.gmra.mxu0 %v620
    %v694 = vpop.f32.mrf.mxu0
    %v695 = vadd.f32 0.0, %v694
    %v696 = vpop.f32.mrf.mxu0
    %v697 = vadd.f32 0.0, %v696
    %698 = vdwg.mxu0
    %v699 = vmul.f32 %v689, %v365
    %v700 = vmul.f32 %v691, %v367
    %v701 = vmul.f32 %v695, %v371
    %v702 = vmul.f32 %v697, %v373
    %v703 = vrot.slane %v699, 4
    %v704 = vadd.f32 %v699, %v703
    %v705 = vrot.slane %v704, 2
    %v706 = vadd.f32 %v704, %v705
    %v707 = vrot.slane %v706, 1
    %v708 = vadd.f32 %v706, %v707
    %v709 = vrot.slane %v700, 4
    %v710 = vadd.f32 %v700, %v709
    %v711 = vrot.slane %v710, 2
    %v712 = vadd.f32 %v710, %v711
    %v713 = vrot.slane %v712, 1
    %v714 = vadd.f32 %v712, %v713
    %v715 = vrot.slane %v701, 4
    %v716 = vadd.f32 %v701, %v715
    %v717 = vrot.slane %v716, 2
    %v718 = vadd.f32 %v716, %v717
    %v719 = vrot.slane %v718, 1
    %v720 = vadd.f32 %v718, %v719
    %v721 = vrot.slane %v702, 4
    %v722 = vadd.f32 %v702, %v721
    %v723 = vrot.slane %v722, 2
    %v724 = vadd.f32 %v722, %v723
    %v725 = vrot.slane %v724, 1
    %v726 = vadd.f32 %v724, %v725
    %v728 = vlaneseq
    %v729 = vshrl.u32 %v728, 7
    %v730 = vsub.s32 0, %v729
    %v731 = vrot.slane %v154, %v730
    %v737 = vsel %vm376, %v720, %v708
    %v738 = vsel %vm376, %v726, %v714
    %741 = vmatprep.subr.mxu0 0.0
    %742 = vmatpush1.msra.mxu0 %v137
    %743 = vmatprep.subr.mxu0 0.0
    %744 = vmatpush1.msra.mxu0 %v136
    %745 = vmatprep.subr.mxu0 0.0
    %746 = vmatpush1.msra.mxu0 %v135
    %747 = vmatprep.subr.mxu0 0.0
    %748 = vmatpush1.msra.mxu0 %v134
    %749 = vmatprep.subr.mxu0 0.0
    %750 = vmatpush1.msra.mxu0 %v133
    %751 = vmatprep.subr.mxu0 0.0
    %752 = vmatpush1.msra.mxu0 %v132
    %753 = vmatprep.subr.mxu0 0.0
    %754 = vmatpush1.msra.mxu0 %v131
    %755 = vmatprep.subr.mxu0 0.0
    %756 = vmatpush1.msra.mxu0 %v130
    %757 = vmatprep.subr.mxu0 0.0
    %758 = vmatpush1.msra.mxu0 %v129
    %759 = vmatprep.subr.mxu0 0.0
    %760 = vmatpush1.msra.mxu0 %v128
    %761 = vmatprep.subr.mxu0 0.0
    %762 = vmatpush1.msra.mxu0 %v127
    %763 = vmatprep.subr.mxu0 0.0
    %764 = vmatpush1.msra.mxu0 %v126
    %765 = vmatprep.subr.mxu0 0.0
    %766 = vmatpush1.msra.mxu0 %v125
    %767 = vmatprep.subr.mxu0 0.0
    %768 = vmatpush1.msra.mxu0 %v124
    %769 = vmatprep.subr.mxu0 0.0
    %770 = vmatpush1.msra.mxu0 %v123
    %771 = vmatprep.subr.mxu0 0.0
    %772 = vmatpush1.msra.mxu0 %v122
    %773 = vmatprep.subr.mxu0 0.0
    %774 = vmatpush2.msra.mxu0 %v153
    %775 = vmatprep.subr.mxu0 0.0
    %776 = vmatpush2.msra.mxu0 %v152
    %777 = vmatprep.subr.mxu0 0.0
    %778 = vmatpush2.msra.mxu0 %v151
    %779 = vmatprep.subr.mxu0 0.0
    %780 = vmatpush2.msra.mxu0 %v150
    %781 = vmatprep.subr.mxu0 0.0
    %782 = vmatpush2.msra.mxu0 %v149
    %783 = vmatprep.subr.mxu0 0.0
    %784 = vmatpush2.msra.mxu0 %v148
    %785 = vmatprep.subr.mxu0 0.0
    %786 = vmatpush2.msra.mxu0 %v147
    %787 = vmatprep.subr.mxu0 0.0
    %788 = vmatpush2.msra.mxu0 %v146
    %789 = vmatprep.subr.mxu0 0.0
    %790 = vmatpush2.msra.mxu0 %v145
    %791 = vmatprep.subr.mxu0 0.0
    %792 = vmatpush2.msra.mxu0 %v144
    %793 = vmatprep.subr.mxu0 0.0
    %794 = vmatpush2.msra.mxu0 %v143
    %795 = vmatprep.subr.mxu0 0.0
    %796 = vmatpush2.msra.mxu0 %v142
    %797 = vmatprep.subr.mxu0 0.0
    %798 = vmatpush2.msra.mxu0 %v141
    %799 = vmatprep.subr.mxu0 0.0
    %800 = vmatpush2.msra.mxu0 %v140
    %801 = vmatprep.subr.mxu0 0.0
    %802 = vmatpush2.msra.mxu0 %v139
    %803 = vmatprep.subr.mxu0 0.0
    %804 = vmatpush2.msra.mxu0 %v138
    %805 = vmatprep.mubr.f32.mxu0 %v738
    %806 = vmatmul.mubr.f32.gmra.mxu0 %v737
    %v807 = vpop.f32.mrf.mxu0
    %v808 = vadd.f32 %v731, %v807
    %v809 = vpop.f32.mrf.mxu0
    %810 = vdwg.mxu0
    %v813 = vunpack.c.l.s4 1966171168
    %v814 = vunpack.c.0.s8 %v813
    %v815 = vlaneseq
    %v816 = vshrl.u32 %v815, 7
    %v817 = vsub.s32 %v814, %v816
    %v818 = vrot.slane %v808, %v817
    %v819 = vcombine.high %v818, %v818
    %v821 = vunpack.c.l.s4 1966171168
    %v822 = vunpack.c.0.s8 %v821
    %v823 = vlaneseq
    %v824 = vshrl.u32 %v823, 7
    %v825 = vsub.s32 %v822, %v824
    %v826 = vrot.slane %v818, %v825
    %v828 = vunpack.c.l.s4 1966171168
    %v829 = vunpack.c.0.s8 %v828
    %v830 = vlaneseq
    %v831 = vshrl.u32 %v830, 7
    %v832 = vsub.s32 %v829, %v831
    %v833 = vrot.slane %v819, %v832
    %v834 = vlaneseq
    %v835 = vshrl.u32 %v834, 7
    %v836 = vsub.s32 0, %v835
    %v837 = vrot.slane %v826, %v836
    %v838 = vlaneseq
    %v839 = vshrl.u32 %v838, 7
    %v840 = vsub.s32 0, %v839
    %v841 = vrot.slane %v833, %v840
    %v844 = vadd.f32 %v60, %v837
    %v845 = vadd.f32 %v61, %v841
    %v846 = vsel %vm171, %v844, 0.0
    %847 = vadd.xlane.f32.xlu0 %v846
    %v848 = vpop.xlane.xlu0 %847
    %v849 = vsel %vm171, %v845, 0.0
    %850 = vadd.xlane.f32.xlu0 %v849
    %v851 = vpop.xlane.xlu0 %850
    %v852 = vmul.f32 %v848, %v178
    %v853 = vmul.f32 %v851, %v178
    %v854 = vsub.f32 %v844, %v852
    %v855 = vsub.f32 %v845, %v853
    %v856 = vmul.f32 %v854, %v854
    %v857 = vmul.f32 %v855, %v855
    %v858 = vsel %vm171, %v856, 0.0
    %859 = vadd.xlane.f32.xlu0 %v858
    %v860 = vpop.xlane.xlu0 %859
    %v861 = vsel %vm171, %v857, 0.0
    %862 = vadd.xlane.f32.xlu0 %v861
    %v863 = vpop.xlane.xlu0 %862
    %v864 = vmul.f32 %v860, %v178
    %v865 = vmul.f32 %v863, %v178
    %v866 = vadd.f32 %v864, 1e-06
    %v867 = vadd.f32 %v865, 1e-06
    %v868 = vrsqrt.pop %v866
    %v869 = vrsqrt.pop %v867
    %v870 = vmul.f32 %v854, %v868
    %v871 = vmul.f32 %v855, %v869
    %v873 = vlaneseq
    %v874 = vshrl.u32 %v873, 7
    %v875 = vsub.s32 0, %v874
    %v876 = vrot.slane %v155, %v875
    %v878 = vmul.f32 %v870, %v876
    %v879 = vmul.f32 %v871, %v876
    %v881 = vlaneseq
    %v882 = vshrl.u32 %v881, 7
    %v883 = vsub.s32 0, %v882
    %v884 = vrot.slane %v156, %v883
    %v886 = vadd.f32 %v878, %v884
    %v887 = vadd.f32 %v879, %v884
    %v889 = vlaneseq
    %v890 = vshrl.u32 %v889, 7
    %v891 = vsub.s32 0, %v890
    %v892 = vrot.slane %v161, %v891
    %v895 = vsel %vm171, %v886, 0
    %v898 = vsel %vm171, %v887, 0
    %900 = vmatprep.subr.mxu0 0.0
    %901 = vmatpush1.msra.mxu0 0.0
    %902 = vmatprep.subr.mxu0 0.0
    %903 = vmatpush1.msra.mxu0 0.0
    %904 = vmatprep.subr.mxu0 0.0
    %905 = vmatpush1.msra.mxu0 0.0
    %906 = vmatprep.subr.mxu0 0.0
    %907 = vmatpush1.msra.mxu0 0.0
    %908 = vmatprep.subr.mxu0 0.0
    %909 = vmatpush1.msra.mxu0 0.0
    %910 = vmatprep.subr.mxu0 0.0
    %911 = vmatpush1.msra.mxu0 0.0
    %912 = vmatprep.subr.mxu0 0.0
    %913 = vmatpush1.msra.mxu0 0.0
    %914 = vmatprep.subr.mxu0 0.0
    %915 = vmatpush1.msra.mxu0 0.0
    %916 = vmatprep.subr.mxu0 0.0
    %917 = vmatpush1.msra.mxu0 0.0
    %918 = vmatprep.subr.mxu0 0.0
    %919 = vmatpush1.msra.mxu0 0.0
    %920 = vmatprep.subr.mxu0 0.0
    %921 = vmatpush1.msra.mxu0 0.0
    %922 = vmatprep.subr.mxu0 0.0
    %923 = vmatpush1.msra.mxu0 0.0
    %924 = vmatprep.subr.mxu0 0.0
    %925 = vmatpush1.msra.mxu0 %v160
    %926 = vmatprep.subr.mxu0 0.0
    %927 = vmatpush1.msra.mxu0 %v159
    %928 = vmatprep.subr.mxu0 0.0
    %929 = vmatpush1.msra.mxu0 %v158
    %930 = vmatprep.subr.mxu0 0.0
    %931 = vmatpush1.msra.mxu0 %v157
    %932 = vmatprep.subr.mxu0 0.0
    %933 = vmatpush2.msra.mxu0 0.0
    %934 = vmatprep.subr.mxu0 0.0
    %935 = vmatpush2.msra.mxu0 0.0
    %936 = vmatprep.subr.mxu0 0.0
    %937 = vmatpush2.msra.mxu0 0.0
    %938 = vmatprep.subr.mxu0 0.0
    %939 = vmatpush2.msra.mxu0 0.0
    %940 = vmatprep.subr.mxu0 0.0
    %941 = vmatpush2.msra.mxu0 0.0
    %942 = vmatprep.subr.mxu0 0.0
    %943 = vmatpush2.msra.mxu0 0.0
    %944 = vmatprep.subr.mxu0 0.0
    %945 = vmatpush2.msra.mxu0 0.0
    %946 = vmatprep.subr.mxu0 0.0
    %947 = vmatpush2.msra.mxu0 0.0
    %948 = vmatprep.subr.mxu0 0.0
    %949 = vmatpush2.msra.mxu0 0.0
    %950 = vmatprep.subr.mxu0 0.0
    %951 = vmatpush2.msra.mxu0 0.0
    %952 = vmatprep.subr.mxu0 0.0
    %953 = vmatpush2.msra.mxu0 0.0
    %954 = vmatprep.subr.mxu0 0.0
    %955 = vmatpush2.msra.mxu0 0.0
    %956 = vmatprep.subr.mxu0 0.0
    %957 = vmatpush2.msra.mxu0 0.0
    %958 = vmatprep.subr.mxu0 0.0
    %959 = vmatpush2.msra.mxu0 0.0
    %960 = vmatprep.subr.mxu0 0.0
    %961 = vmatpush2.msra.mxu0 0.0
    %962 = vmatprep.subr.mxu0 0.0
    %963 = vmatpush2.msra.mxu0 0.0
    %964 = vmatprep.mubr.f32.mxu0 0.0
    %965 = vmatmul.mubr.f32.gmra.mxu0 %v895
    %v966 = vpop.f32.mrf.mxu0
    %v967 = vadd.f32 %v892, %v966
    %v968 = vpop.f32.mrf.mxu0
    %969 = vmatprep.mubr.f32.mxu0 0.0
    %970 = vmatmul.mubr.f32.gmra.mxu0 %v898
    %v971 = vpop.f32.mrf.mxu0
    %v972 = vadd.f32 %v892, %v971
    %v973 = vpop.f32.mrf.mxu0
    %974 = vdwg.mxu0
    %v975 = vmul.f32 %v967, 0.5
    %v976 = vmul.f32 %v972, 0.5
    %v977 = vmul.f32 %v967, 0.70710677
    %v978 = vmul.f32 %v972, 0.70710677
    %v979 = verf.f32.pop %v977
    %v980 = verf.f32.pop %v978
    %v981 = vadd.f32 %v979, 1.0
    %v982 = vadd.f32 %v980, 1.0
    %v983 = vmul.f32 %v975, %v981
    %v984 = vmul.f32 %v976, %v982
    %v986 = vlaneseq
    %v987 = vshrl.u32 %v986, 7
    %v988 = vsub.s32 0, %v987
    %v989 = vrot.slane %v170, %v988
    %vm991 = vcmask 523264
    %v993 = vsel %vm991, %v983, 0
    %v996 = vsel %vm991, %v984, 0
    %998 = vmatprep.subr.mxu0 0.0
    %999 = vmatpush1.msra.mxu0 0.0
    %1000 = vmatprep.subr.mxu0 0.0
    %1001 = vmatpush1.msra.mxu0 0.0
    %1002 = vmatprep.subr.mxu0 0.0
    %1003 = vmatpush1.msra.mxu0 0.0
    %1004 = vmatprep.subr.mxu0 0.0
    %1005 = vmatpush1.msra.mxu0 0.0
    %1006 = vmatprep.subr.mxu0 0.0
    %1007 = vmatpush1.msra.mxu0 0.0
    %1008 = vmatprep.subr.mxu0 0.0
    %1009 = vmatpush1.msra.mxu0 0.0
    %1010 = vmatprep.subr.mxu0 0.0
    %1011 = vmatpush1.msra.mxu0 0.0
    %1012 = vmatprep.subr.mxu0 0.0
    %1013 = vmatpush1.msra.mxu0 0.0
    %1014 = vmatprep.subr.mxu0 0.0
    %1015 = vmatpush1.msra.mxu0 %v169
    %1016 = vmatprep.subr.mxu0 0.0
    %1017 = vmatpush1.msra.mxu0 %v168
    %1018 = vmatprep.subr.mxu0 0.0
    %1019 = vmatpush1.msra.mxu0 %v167
    %1020 = vmatprep.subr.mxu0 0.0
    %1021 = vmatpush1.msra.mxu0 %v166
    %1022 = vmatprep.subr.mxu0 0.0
    %1023 = vmatpush1.msra.mxu0 %v165
    %1024 = vmatprep.subr.mxu0 0.0
    %1025 = vmatpush1.msra.mxu0 %v164
    %1026 = vmatprep.subr.mxu0 0.0
    %1027 = vmatpush1.msra.mxu0 %v163
    %1028 = vmatprep.subr.mxu0 0.0
    %1029 = vmatpush1.msra.mxu0 %v162
    %1030 = vmatprep.subr.mxu0 0.0
    %1031 = vmatpush2.msra.mxu0 0.0
    %1032 = vmatprep.subr.mxu0 0.0
    %1033 = vmatpush2.msra.mxu0 0.0
    %1034 = vmatprep.subr.mxu0 0.0
    %1035 = vmatpush2.msra.mxu0 0.0
    %1036 = vmatprep.subr.mxu0 0.0
    %1037 = vmatpush2.msra.mxu0 0.0
    %1038 = vmatprep.subr.mxu0 0.0
    %1039 = vmatpush2.msra.mxu0 0.0
    %1040 = vmatprep.subr.mxu0 0.0
    %1041 = vmatpush2.msra.mxu0 0.0
    %1042 = vmatprep.subr.mxu0 0.0
    %1043 = vmatpush2.msra.mxu0 0.0
    %1044 = vmatprep.subr.mxu0 0.0
    %1045 = vmatpush2.msra.mxu0 0.0
    %1046 = vmatprep.subr.mxu0 0.0
    %1047 = vmatpush2.msra.mxu0 0.0
    %1048 = vmatprep.subr.mxu0 0.0
    %1049 = vmatpush2.msra.mxu0 0.0
    %1050 = vmatprep.subr.mxu0 0.0
    %1051 = vmatpush2.msra.mxu0 0.0
    %1052 = vmatprep.subr.mxu0 0.0
    %1053 = vmatpush2.msra.mxu0 0.0
    %1054 = vmatprep.subr.mxu0 0.0
    %1055 = vmatpush2.msra.mxu0 0.0
    %1056 = vmatprep.subr.mxu0 0.0
    %1057 = vmatpush2.msra.mxu0 0.0
    %1058 = vmatprep.subr.mxu0 0.0
    %1059 = vmatpush2.msra.mxu0 0.0
    %1060 = vmatprep.subr.mxu0 0.0
    %1061 = vmatpush2.msra.mxu0 0.0
    %1062 = vmatprep.mubr.f32.mxu0 0.0
    %1063 = vmatmul.mubr.f32.gmra.mxu0 %v993
    %v1064 = vpop.f32.mrf.mxu0
    %v1065 = vadd.f32 %v989, %v1064
    %v1066 = vpop.f32.mrf.mxu0
    %1067 = vmatprep.mubr.f32.mxu0 0.0
    %1068 = vmatmul.mubr.f32.gmra.mxu0 %v996
    %v1069 = vpop.f32.mrf.mxu0
    %v1070 = vadd.f32 %v989, %v1069
    %v1071 = vpop.f32.mrf.mxu0
    %1072 = vdwg.mxu0
    %v1073 = vadd.f32 %v844, %v1065
    %v1074 = vadd.f32 %v845, %v1070
    %s1075 = scalar_lea.vmem %s3, 1
    %v1076 = vld [vmem:[%s1075] sm:$0x1]
    %s1077 = scalar_lea.vmem %s4, 1
    %v1078 = vld [vmem:[%s1077] sm:$0x1]
    %s1079 = scalar_lea.vmem %s5, 64
    %v1080 = vld [vmem:[%s1079] sm:$0xff]
    %v1081 = vld [vmem:[%s1079 + $0x8] sm:$0xff]
    %v1082 = vld [vmem:[%s1079 + $0x10] sm:$0xff]
    %v1083 = vld [vmem:[%s1079 + $0x18] sm:$0xff]
    %v1084 = vld [vmem:[%s1079 + $0x20] sm:$0xff]
    %v1085 = vld [vmem:[%s1079 + $0x28] sm:$0xff]
    %v1086 = vld [vmem:[%s1079 + $0x30] sm:$0xff]
    %v1087 = vld [vmem:[%s1079 + $0x38] sm:$0xff]
    %s1088 = scalar_lea.vmem %s6, 64
    %v1089 = vld [vmem:[%s1088] sm:$0xff]
    %v1090 = vld [vmem:[%s1088 + $0x8] sm:$0xff]
    %v1091 = vld [vmem:[%s1088 + $0x10] sm:$0xff]
    %v1092 = vld [vmem:[%s1088 + $0x18] sm:$0xff]
    %v1093 = vld [vmem:[%s1088 + $0x20] sm:$0xff]
    %v1094 = vld [vmem:[%s1088 + $0x28] sm:$0xff]
    %v1095 = vld [vmem:[%s1088 + $0x30] sm:$0xff]
    %v1096 = vld [vmem:[%s1088 + $0x38] sm:$0xff]
    %s1097 = scalar_lea.vmem %s7, 64
    %v1098 = vld [vmem:[%s1097] sm:$0xff]
    %v1099 = vld [vmem:[%s1097 + $0x8] sm:$0xff]
    %v1100 = vld [vmem:[%s1097 + $0x10] sm:$0xff]
    %v1101 = vld [vmem:[%s1097 + $0x18] sm:$0xff]
    %v1102 = vld [vmem:[%s1097 + $0x20] sm:$0xff]
    %v1103 = vld [vmem:[%s1097 + $0x28] sm:$0xff]
    %v1104 = vld [vmem:[%s1097 + $0x30] sm:$0xff]
    %v1105 = vld [vmem:[%s1097 + $0x38] sm:$0xff]
    %s1106 = scalar_lea.vmem %s8, 256
    %v1107 = vld [vmem:[%s1106] sm:$0xff]
    %v1108 = vld [vmem:[%s1106 + $0x8] sm:$0xff]
    %v1109 = vld [vmem:[%s1106 + $0x10] sm:$0xff]
    %v1110 = vld [vmem:[%s1106 + $0x18] sm:$0xff]
    %v1111 = vld [vmem:[%s1106 + $0x20] sm:$0xff]
    %v1112 = vld [vmem:[%s1106 + $0x28] sm:$0xff]
    %v1113 = vld [vmem:[%s1106 + $0x30] sm:$0xff]
    %v1114 = vld [vmem:[%s1106 + $0x38] sm:$0xff]
    %v1115 = vld [vmem:[%s1106 + $0x40] sm:$0xff]
    %v1116 = vld [vmem:[%s1106 + $0x48] sm:$0xff]
    %v1117 = vld [vmem:[%s1106 + $0x50] sm:$0xff]
    %v1118 = vld [vmem:[%s1106 + $0x58] sm:$0xff]
    %v1119 = vld [vmem:[%s1106 + $0x60] sm:$0xff]
    %v1120 = vld [vmem:[%s1106 + $0x68] sm:$0xff]
    %v1121 = vld [vmem:[%s1106 + $0x70] sm:$0xff]
    %v1122 = vld [vmem:[%s1106 + $0x78] sm:$0xff]
    %v1123 = vld [vmem:[%s1106 + $0x80] sm:$0xff]
    %v1124 = vld [vmem:[%s1106 + $0x88] sm:$0xff]
    %v1125 = vld [vmem:[%s1106 + $0x90] sm:$0xff]
    %v1126 = vld [vmem:[%s1106 + $0x98] sm:$0xff]
    %v1127 = vld [vmem:[%s1106 + $0xa0] sm:$0xff]
    %v1128 = vld [vmem:[%s1106 + $0xa8] sm:$0xff]
    %v1129 = vld [vmem:[%s1106 + $0xb0] sm:$0xff]
    %v1130 = vld [vmem:[%s1106 + $0xb8] sm:$0xff]
    %v1131 = vld [vmem:[%s1106 + $0xc0] sm:$0xff]
    %v1132 = vld [vmem:[%s1106 + $0xc8] sm:$0xff]
    %v1133 = vld [vmem:[%s1106 + $0xd0] sm:$0xff]
    %v1134 = vld [vmem:[%s1106 + $0xd8] sm:$0xff]
    %v1135 = vld [vmem:[%s1106 + $0xe0] sm:$0xff]
    %v1136 = vld [vmem:[%s1106 + $0xe8] sm:$0xff]
    %v1137 = vld [vmem:[%s1106 + $0xf0] sm:$0xff]
    %v1138 = vld [vmem:[%s1106 + $0xf8] sm:$0xff]
    %s1139 = scalar_lea.vmem %s9, 1
    %v1140 = vld [vmem:[%s1139] sm:$0x1]
    %s1141 = scalar_lea.vmem %s10, 1
    %v1142 = vld [vmem:[%s1141] sm:$0x1]
    %s1143 = scalar_lea.vmem %s11, 1
    %v1144 = vld [vmem:[%s1143] sm:$0x1]
    %s1145 = scalar_lea.vmem %s12, 32
    %v1146 = vld [vmem:[%s1145] sm:$0xff]
    %v1147 = vld [vmem:[%s1145 + $0x8] sm:$0xff]
    %v1148 = vld [vmem:[%s1145 + $0x10] sm:$0xff]
    %v1149 = vld [vmem:[%s1145 + $0x18] sm:$0xff]
    %s1150 = scalar_lea.vmem %s13, 1
    %v1151 = vld [vmem:[%s1150] sm:$0x1]
    %s1152 = scalar_lea.vmem %s14, 64
    %v1153 = vld [vmem:[%s1152] sm:$0xff]
    %v1154 = vld [vmem:[%s1152 + $0x8] sm:$0xff]
    %v1155 = vld [vmem:[%s1152 + $0x10] sm:$0xff]
    %v1156 = vld [vmem:[%s1152 + $0x18] sm:$0xff]
    %v1157 = vld [vmem:[%s1152 + $0x20] sm:$0xff]
    %v1158 = vld [vmem:[%s1152 + $0x28] sm:$0xff]
    %v1159 = vld [vmem:[%s1152 + $0x30] sm:$0xff]
    %v1160 = vld [vmem:[%s1152 + $0x38] sm:$0xff]
    %s1161 = scalar_lea.vmem %s15, 1
    %v1162 = vld [vmem:[%s1161] sm:$0x1]
    %v1163 = vsel %vm171, %v1073, 0.0
    %1164 = vadd.xlane.f32.xlu0 %v1163
    %v1165 = vpop.xlane.xlu0 %1164
    %v1166 = vsel %vm171, %v1074, 0.0
    %1167 = vadd.xlane.f32.xlu0 %v1166
    %v1168 = vpop.xlane.xlu0 %1167
    %v1169 = vmul.f32 %v1165, %v178
    %v1170 = vmul.f32 %v1168, %v178
    %v1171 = vsub.f32 %v1073, %v1169
    %v1172 = vsub.f32 %v1074, %v1170
    %v1173 = vmul.f32 %v1171, %v1171
    %v1174 = vmul.f32 %v1172, %v1172
    %v1175 = vsel %vm171, %v1173, 0.0
    %1176 = vadd.xlane.f32.xlu0 %v1175
    %v1177 = vpop.xlane.xlu0 %1176
    %v1178 = vsel %vm171, %v1174, 0.0
    %1179 = vadd.xlane.f32.xlu0 %v1178
    %v1180 = vpop.xlane.xlu0 %1179
    %v1181 = vmul.f32 %v1177, %v178
    %v1182 = vmul.f32 %v1180, %v178
    %v1183 = vadd.f32 %v1181, 1e-06
    %v1184 = vadd.f32 %v1182, 1e-06
    %v1185 = vrsqrt.pop %v1183
    %v1186 = vrsqrt.pop %v1184
    %v1187 = vmul.f32 %v1171, %v1185
    %v1188 = vmul.f32 %v1172, %v1186
    %v1190 = vlaneseq
    %v1191 = vshrl.u32 %v1190, 7
    %v1192 = vsub.s32 0, %v1191
    %v1193 = vrot.slane %v1076, %v1192
    %v1195 = vmul.f32 %v1187, %v1193
    %v1196 = vmul.f32 %v1188, %v1193
    %v1198 = vlaneseq
    %v1199 = vshrl.u32 %v1198, 7
    %v1200 = vsub.s32 0, %v1199
    %v1201 = vrot.slane %v1078, %v1200
    %v1203 = vadd.f32 %v1195, %v1201
    %v1204 = vadd.f32 %v1196, %v1201
    %v1206 = vsel %vm171, %v1203, 0
    %v1209 = vsel %vm171, %v1204, 0
    %1211 = vmatprep.subr.mxu0 0.0
    %1212 = vmatpush1.msra.mxu0 0.0
    %1213 = vmatprep.subr.mxu0 0.0
    %1214 = vmatpush1.msra.mxu0 0.0
    %1215 = vmatprep.subr.mxu0 0.0
    %1216 = vmatpush1.msra.mxu0 0.0
    %1217 = vmatprep.subr.mxu0 0.0
    %1218 = vmatpush1.msra.mxu0 0.0
    %1219 = vmatprep.subr.mxu0 0.0
    %1220 = vmatpush1.msra.mxu0 0.0
    %1221 = vmatprep.subr.mxu0 0.0
    %1222 = vmatpush1.msra.mxu0 0.0
    %1223 = vmatprep.subr.mxu0 0.0
    %1224 = vmatpush1.msra.mxu0 0.0
    %1225 = vmatprep.subr.mxu0 0.0
    %1226 = vmatpush1.msra.mxu0 0.0
    %1227 = vmatprep.subr.mxu0 0.0
    %1228 = vmatpush1.msra.mxu0 0.0
    %1229 = vmatprep.subr.mxu0 0.0
    %1230 = vmatpush1.msra.mxu0 0.0
    %1231 = vmatprep.subr.mxu0 0.0
    %1232 = vmatpush1.msra.mxu0 0.0
    %1233 = vmatprep.subr.mxu0 0.0
    %1234 = vmatpush1.msra.mxu0 0.0
    %1235 = vmatprep.subr.mxu0 %v1096
    %1236 = vmatpush1.msra.mxu0 %v1095
    %1237 = vmatprep.subr.mxu0 %v1094
    %1238 = vmatpush1.msra.mxu0 %v1093
    %1239 = vmatprep.subr.mxu0 %v1092
    %1240 = vmatpush1.msra.mxu0 %v1091
    %1241 = vmatprep.subr.mxu0 %v1090
    %1242 = vmatpush1.msra.mxu0 %v1089
    %1243 = vmatprep.subr.mxu0 0.0
    %1244 = vmatpush2.msra.mxu0 0.0
    %1245 = vmatprep.subr.mxu0 0.0
    %1246 = vmatpush2.msra.mxu0 0.0
    %1247 = vmatprep.subr.mxu0 0.0
    %1248 = vmatpush2.msra.mxu0 0.0
    %1249 = vmatprep.subr.mxu0 0.0
    %1250 = vmatpush2.msra.mxu0 0.0
    %1251 = vmatprep.subr.mxu0 0.0
    %1252 = vmatpush2.msra.mxu0 0.0
    %1253 = vmatprep.subr.mxu0 0.0
    %1254 = vmatpush2.msra.mxu0 0.0
    %1255 = vmatprep.subr.mxu0 0.0
    %1256 = vmatpush2.msra.mxu0 0.0
    %1257 = vmatprep.subr.mxu0 0.0
    %1258 = vmatpush2.msra.mxu0 0.0
    %1259 = vmatprep.subr.mxu0 0.0
    %1260 = vmatpush2.msra.mxu0 0.0
    %1261 = vmatprep.subr.mxu0 0.0
    %1262 = vmatpush2.msra.mxu0 0.0
    %1263 = vmatprep.subr.mxu0 0.0
    %1264 = vmatpush2.msra.mxu0 0.0
    %1265 = vmatprep.subr.mxu0 0.0
    %1266 = vmatpush2.msra.mxu0 0.0
    %1267 = vmatprep.subr.mxu0 0.0
    %1268 = vmatpush2.msra.mxu0 0.0
    %1269 = vmatprep.subr.mxu0 0.0
    %1270 = vmatpush2.msra.mxu0 0.0
    %1271 = vmatprep.subr.mxu0 0.0
    %1272 = vmatpush2.msra.mxu0 0.0
    %1273 = vmatprep.subr.mxu0 0.0
    %1274 = vmatpush2.msra.mxu0 0.0
    %1275 = vmatprep.mubr.f32.mxu0 0.0
    %1276 = vmatmul.mubr.f32.gmra.mxu0 %v1206
    %v1277 = vpop.f32.mrf.mxu0
    %v1278 = vadd.f32 0.0, %v1277
    %v1279 = vpop.f32.mrf.mxu0
    %v1280 = vadd.f32 0.0, %v1279
    %1281 = vmatprep.mubr.f32.mxu0 0.0
    %1282 = vmatmul.mubr.f32.gmra.mxu0 %v1209
    %v1283 = vpop.f32.mrf.mxu0
    %v1284 = vadd.f32 0.0, %v1283
    %v1285 = vpop.f32.mrf.mxu0
    %v1286 = vadd.f32 0.0, %v1285
    %1287 = vdwg.mxu0
    %1288 = vmatprep.subr.mxu0 0.0
    %1289 = vmatpush1.msra.mxu0 0.0
    %1290 = vmatprep.subr.mxu0 0.0
    %1291 = vmatpush1.msra.mxu0 0.0
    %1292 = vmatprep.subr.mxu0 0.0
    %1293 = vmatpush1.msra.mxu0 0.0
    %1294 = vmatprep.subr.mxu0 0.0
    %1295 = vmatpush1.msra.mxu0 0.0
    %1296 = vmatprep.subr.mxu0 0.0
    %1297 = vmatpush1.msra.mxu0 0.0
    %1298 = vmatprep.subr.mxu0 0.0
    %1299 = vmatpush1.msra.mxu0 0.0
    %1300 = vmatprep.subr.mxu0 0.0
    %1301 = vmatpush1.msra.mxu0 0.0
    %1302 = vmatprep.subr.mxu0 0.0
    %1303 = vmatpush1.msra.mxu0 0.0
    %1304 = vmatprep.subr.mxu0 0.0
    %1305 = vmatpush1.msra.mxu0 0.0
    %1306 = vmatprep.subr.mxu0 0.0
    %1307 = vmatpush1.msra.mxu0 0.0
    %1308 = vmatprep.subr.mxu0 0.0
    %1309 = vmatpush1.msra.mxu0 0.0
    %1310 = vmatprep.subr.mxu0 0.0
    %1311 = vmatpush1.msra.mxu0 0.0
    %1312 = vmatprep.subr.mxu0 %v1105
    %1313 = vmatpush1.msra.mxu0 %v1104
    %1314 = vmatprep.subr.mxu0 %v1103
    %1315 = vmatpush1.msra.mxu0 %v1102
    %1316 = vmatprep.subr.mxu0 %v1101
    %1317 = vmatpush1.msra.mxu0 %v1100
    %1318 = vmatprep.subr.mxu0 %v1099
    %1319 = vmatpush1.msra.mxu0 %v1098
    %1320 = vmatprep.subr.mxu0 0.0
    %1321 = vmatpush2.msra.mxu0 0.0
    %1322 = vmatprep.subr.mxu0 0.0
    %1323 = vmatpush2.msra.mxu0 0.0
    %1324 = vmatprep.subr.mxu0 0.0
    %1325 = vmatpush2.msra.mxu0 0.0
    %1326 = vmatprep.subr.mxu0 0.0
    %1327 = vmatpush2.msra.mxu0 0.0
    %1328 = vmatprep.subr.mxu0 0.0
    %1329 = vmatpush2.msra.mxu0 0.0
    %1330 = vmatprep.subr.mxu0 0.0
    %1331 = vmatpush2.msra.mxu0 0.0
    %1332 = vmatprep.subr.mxu0 0.0
    %1333 = vmatpush2.msra.mxu0 0.0
    %1334 = vmatprep.subr.mxu0 0.0
    %1335 = vmatpush2.msra.mxu0 0.0
    %1336 = vmatprep.subr.mxu0 0.0
    %1337 = vmatpush2.msra.mxu0 0.0
    %1338 = vmatprep.subr.mxu0 0.0
    %1339 = vmatpush2.msra.mxu0 0.0
    %1340 = vmatprep.subr.mxu0 0.0
    %1341 = vmatpush2.msra.mxu0 0.0
    %1342 = vmatprep.subr.mxu0 0.0
    %1343 = vmatpush2.msra.mxu0 0.0
    %1344 = vmatprep.subr.mxu0 0.0
    %1345 = vmatpush2.msra.mxu0 0.0
    %1346 = vmatprep.subr.mxu0 0.0
    %1347 = vmatpush2.msra.mxu0 0.0
    %1348 = vmatprep.subr.mxu0 0.0
    %1349 = vmatpush2.msra.mxu0 0.0
    %1350 = vmatprep.subr.mxu0 0.0
    %1351 = vmatpush2.msra.mxu0 0.0
    %1352 = vmatprep.mubr.f32.mxu0 0.0
    %1353 = vmatmul.mubr.f32.gmra.mxu0 %v1206
    %v1354 = vpop.f32.mrf.mxu0
    %v1355 = vadd.f32 0.0, %v1354
    %v1356 = vpop.f32.mrf.mxu0
    %v1357 = vadd.f32 0.0, %v1356
    %1358 = vmatprep.mubr.f32.mxu0 0.0
    %1359 = vmatmul.mubr.f32.gmra.mxu0 %v1209
    %v1360 = vpop.f32.mrf.mxu0
    %v1361 = vadd.f32 0.0, %v1360
    %v1362 = vpop.f32.mrf.mxu0
    %v1363 = vadd.f32 0.0, %v1362
    %1364 = vdwg.mxu0
    %v1365 = vrot.slane %v1204, 7
    %v1366 = vsel %vm376, %v1365, %v1203
    %v1367 = vsel %vm171, %v1366, 0
    %1369 = vmatprep.subr.mxu0 0.0
    %1370 = vmatpush1.msra.mxu0 0.0
    %1371 = vmatprep.subr.mxu0 0.0
    %1372 = vmatpush1.msra.mxu0 0.0
    %1373 = vmatprep.subr.mxu0 0.0
    %1374 = vmatpush1.msra.mxu0 0.0
    %1375 = vmatprep.subr.mxu0 0.0
    %1376 = vmatpush1.msra.mxu0 0.0
    %1377 = vmatprep.subr.mxu0 0.0
    %1378 = vmatpush1.msra.mxu0 0.0
    %1379 = vmatprep.subr.mxu0 0.0
    %1380 = vmatpush1.msra.mxu0 0.0
    %1381 = vmatprep.subr.mxu0 0.0
    %1382 = vmatpush1.msra.mxu0 0.0
    %1383 = vmatprep.subr.mxu0 0.0
    %1384 = vmatpush1.msra.mxu0 0.0
    %1385 = vmatprep.subr.mxu0 0.0
    %1386 = vmatpush1.msra.mxu0 0.0
    %1387 = vmatprep.subr.mxu0 0.0
    %1388 = vmatpush1.msra.mxu0 0.0
    %1389 = vmatprep.subr.mxu0 0.0
    %1390 = vmatpush1.msra.mxu0 0.0
    %1391 = vmatprep.subr.mxu0 0.0
    %1392 = vmatpush1.msra.mxu0 0.0
    %1393 = vmatprep.subr.mxu0 %v1087
    %1394 = vmatpush1.msra.mxu0 %v1086
    %1395 = vmatprep.subr.mxu0 %v1085
    %1396 = vmatpush1.msra.mxu0 %v1084
    %1397 = vmatprep.subr.mxu0 %v1083
    %1398 = vmatpush1.msra.mxu0 %v1082
    %1399 = vmatprep.subr.mxu0 %v1081
    %1400 = vmatpush1.msra.mxu0 %v1080
    %1401 = vmatprep.subr.mxu0 0.0
    %1402 = vmatpush2.msra.mxu0 0.0
    %1403 = vmatprep.subr.mxu0 0.0
    %1404 = vmatpush2.msra.mxu0 0.0
    %1405 = vmatprep.subr.mxu0 0.0
    %1406 = vmatpush2.msra.mxu0 0.0
    %1407 = vmatprep.subr.mxu0 0.0
    %1408 = vmatpush2.msra.mxu0 0.0
    %1409 = vmatprep.subr.mxu0 0.0
    %1410 = vmatpush2.msra.mxu0 0.0
    %1411 = vmatprep.subr.mxu0 0.0
    %1412 = vmatpush2.msra.mxu0 0.0
    %1413 = vmatprep.subr.mxu0 0.0
    %1414 = vmatpush2.msra.mxu0 0.0
    %1415 = vmatprep.subr.mxu0 0.0
    %1416 = vmatpush2.msra.mxu0 0.0
    %1417 = vmatprep.subr.mxu0 0.0
    %1418 = vmatpush2.msra.mxu0 0.0
    %1419 = vmatprep.subr.mxu0 0.0
    %1420 = vmatpush2.msra.mxu0 0.0
    %1421 = vmatprep.subr.mxu0 0.0
    %1422 = vmatpush2.msra.mxu0 0.0
    %1423 = vmatprep.subr.mxu0 0.0
    %1424 = vmatpush2.msra.mxu0 0.0
    %1425 = vmatprep.subr.mxu0 0.0
    %1426 = vmatpush2.msra.mxu0 0.0
    %1427 = vmatprep.subr.mxu0 0.0
    %1428 = vmatpush2.msra.mxu0 0.0
    %1429 = vmatprep.subr.mxu0 0.0
    %1430 = vmatpush2.msra.mxu0 0.0
    %1431 = vmatprep.subr.mxu0 0.0
    %1432 = vmatpush2.msra.mxu0 0.0
    %1433 = vmatprep.mubr.f32.mxu0 0.0
    %1434 = vmatmul.mubr.f32.gmra.mxu0 %v1367
    %v1435 = vpop.f32.mrf.mxu0
    %v1436 = vadd.f32 0.0, %v1435
    %v1437 = vpop.f32.mrf.mxu0
    %v1438 = vadd.f32 0.0, %v1437
    %1439 = vdwg.mxu0
    %v1442 = vcombine.low %v1436, %v1438
    %v1444 = vunpack.c.l.s4 1966171168
    %v1445 = vunpack.c.0.s8 %v1444
    %v1446 = vlaneseq
    %v1447 = vshrl.u32 %v1446, 7
    %v1448 = vsub.s32 %v1445, %v1447
    %v1449 = vrot.slane %v1442, %v1448
    %v1450 = vcombine.high %v1449, %v1449
    %v1452 = vunpack.c.l.s4 1966171168
    %v1453 = vunpack.c.0.s8 %v1452
    %v1454 = vlaneseq
    %v1455 = vshrl.u32 %v1454, 7
    %v1456 = vsub.s32 %v1453, %v1455
    %v1457 = vrot.slane %v1449, %v1456
    %v1459 = vunpack.c.l.s4 1966171168
    %v1460 = vunpack.c.0.s8 %v1459
    %v1461 = vlaneseq
    %v1462 = vshrl.u32 %v1461, 7
    %v1463 = vsub.s32 %v1460, %v1462
    %v1464 = vrot.slane %v1450, %v1463
    %v1465 = vlaneseq
    %v1466 = vshrl.u32 %v1465, 7
    %v1467 = vsub.s32 0, %v1466
    %v1468 = vrot.slane %v1457, %v1467
    %v1469 = vlaneseq
    %v1470 = vshrl.u32 %v1469, 7
    %v1471 = vsub.s32 1, %v1470
    %v1472 = vrot.slane %v1457, %v1471
    %v1473 = vlaneseq
    %v1474 = vshrl.u32 %v1473, 7
    %v1475 = vsub.s32 0, %v1474
    %v1476 = vrot.slane %v1464, %v1475
    %v1477 = vlaneseq
    %v1478 = vshrl.u32 %v1477, 7
    %v1479 = vsub.s32 1, %v1478
    %v1480 = vrot.slane %v1464, %v1479
    %v1485 = vmul.f32 %v1278, %v1468
    %v1486 = vmul.f32 %v1280, %v1472
    %v1487 = vmul.f32 %v1284, %v1476
    %v1488 = vmul.f32 %v1286, %v1480
    %1489 = vmatprep.subr.mxu0 0.0
    %1490 = vmatpush1.msra.mxu0 %v77
    %1491 = vmatprep.subr.mxu0 0.0
    %1492 = vmatpush1.msra.mxu0 %v76
    %1493 = vmatprep.subr.mxu0 0.0
    %1494 = vmatpush1.msra.mxu0 %v75
    %1495 = vmatprep.subr.mxu0 0.0
    %1496 = vmatpush1.msra.mxu0 %v74
    %1497 = vmatprep.subr.mxu0 0.0
    %1498 = vmatpush1.msra.mxu0 %v73
    %1499 = vmatprep.subr.mxu0 0.0
    %1500 = vmatpush1.msra.mxu0 %v72
    %1501 = vmatprep.subr.mxu0 0.0
    %1502 = vmatpush1.msra.mxu0 %v71
    %1503 = vmatprep.subr.mxu0 0.0
    %1504 = vmatpush1.msra.mxu0 %v70
    %1505 = vmatprep.subr.mxu0 0.0
    %1506 = vmatpush1.msra.mxu0 %v69
    %1507 = vmatprep.subr.mxu0 0.0
    %1508 = vmatpush1.msra.mxu0 %v68
    %1509 = vmatprep.subr.mxu0 0.0
    %1510 = vmatpush1.msra.mxu0 %v67
    %1511 = vmatprep.subr.mxu0 0.0
    %1512 = vmatpush1.msra.mxu0 %v66
    %1513 = vmatprep.subr.mxu0 0.0
    %1514 = vmatpush1.msra.mxu0 %v65
    %1515 = vmatprep.subr.mxu0 0.0
    %1516 = vmatpush1.msra.mxu0 %v64
    %1517 = vmatprep.subr.mxu0 0.0
    %1518 = vmatpush1.msra.mxu0 %v63
    %1519 = vmatprep.subr.mxu0 0.0
    %1520 = vmatpush1.msra.mxu0 %v62
    %1521 = vmatprep.subr.mxu0 0.0
    %1522 = vmatpush2.msra.mxu0 %v93
    %1523 = vmatprep.subr.mxu0 0.0
    %1524 = vmatpush2.msra.mxu0 %v92
    %1525 = vmatprep.subr.mxu0 0.0
    %1526 = vmatpush2.msra.mxu0 %v91
    %1527 = vmatprep.subr.mxu0 0.0
    %1528 = vmatpush2.msra.mxu0 %v90
    %1529 = vmatprep.subr.mxu0 0.0
    %1530 = vmatpush2.msra.mxu0 %v89
    %1531 = vmatprep.subr.mxu0 0.0
    %1532 = vmatpush2.msra.mxu0 %v88
    %1533 = vmatprep.subr.mxu0 0.0
    %1534 = vmatpush2.msra.mxu0 %v87
    %1535 = vmatprep.subr.mxu0 0.0
    %1536 = vmatpush2.msra.mxu0 %v86
    %1537 = vmatprep.subr.mxu0 0.0
    %1538 = vmatpush2.msra.mxu0 %v85
    %1539 = vmatprep.subr.mxu0 0.0
    %1540 = vmatpush2.msra.mxu0 %v84
    %1541 = vmatprep.subr.mxu0 0.0
    %1542 = vmatpush2.msra.mxu0 %v83
    %1543 = vmatprep.subr.mxu0 0.0
    %1544 = vmatpush2.msra.mxu0 %v82
    %1545 = vmatprep.subr.mxu0 0.0
    %1546 = vmatpush2.msra.mxu0 %v81
    %1547 = vmatprep.subr.mxu0 0.0
    %1548 = vmatpush2.msra.mxu0 %v80
    %1549 = vmatprep.subr.mxu0 0.0
    %1550 = vmatpush2.msra.mxu0 %v79
    %1551 = vmatprep.subr.mxu0 0.0
    %1552 = vmatpush2.msra.mxu0 %v78
    %1553 = vmatprep.mubr.f32.mxu0 %v1486
    %1554 = vmatmul.mubr.f32.gmra.mxu0 %v1485
    %v1555 = vpop.f32.mrf.mxu0
    %v1556 = vadd.f32 0.0, %v1555
    %v1557 = vpop.f32.mrf.mxu0
    %1558 = vmatprep.mubr.f32.mxu0 %v1488
    %1559 = vmatmul.mubr.f32.gmra.mxu0 %v1487
    %v1560 = vpop.f32.mrf.mxu0
    %v1561 = vadd.f32 0.0, %v1560
    %v1562 = vpop.f32.mrf.mxu0
    %1563 = vdwg.mxu0
    %v1564 = vmul.f32 %v1556, 0.5
    %v1565 = vmul.f32 %v1561, 0.5
    %v1566 = vsel %vm577, %v1564, -inf
    %v1567 = vrot.slane %v1566, 4
    %v1568 = vmax.f32 %v1566, %v1567
    %v1569 = vrot.slane %v1568, 2
    %v1570 = vmax.f32 %v1568, %v1569
    %v1571 = vrot.slane %v1570, 1
    %v1572 = vmax.f32 %v1570, %v1571
    %v1573 = vsel %vm577, %v1565, -inf
    %v1574 = vrot.slane %v1573, 4
    %v1575 = vmax.f32 %v1573, %v1574
    %v1576 = vrot.slane %v1575, 2
    %v1577 = vmax.f32 %v1575, %v1576
    %v1578 = vrot.slane %v1577, 1
    %v1579 = vmax.f32 %v1577, %v1578
    %v1580 = vsub.f32 %v1564, %v1572
    %v1581 = vsub.f32 %v1565, %v1579
    %v1582 = vmul.f32 %v1580, 1.442695
    %v1583 = vpow.pop %v1582
    %v1584 = vmul.f32 %v1581, 1.442695
    %v1585 = vpow.pop %v1584
    %v1586 = vsel %vm577, %v1583, 0.0
    %v1587 = vrot.slane %v1586, 4
    %v1588 = vadd.f32 %v1586, %v1587
    %v1589 = vrot.slane %v1588, 2
    %v1590 = vadd.f32 %v1588, %v1589
    %v1591 = vrot.slane %v1590, 1
    %v1592 = vadd.f32 %v1590, %v1591
    %v1593 = vsel %vm577, %v1585, 0.0
    %v1594 = vrot.slane %v1593, 4
    %v1595 = vadd.f32 %v1593, %v1594
    %v1596 = vrot.slane %v1595, 2
    %v1597 = vadd.f32 %v1595, %v1596
    %v1598 = vrot.slane %v1597, 1
    %v1599 = vadd.f32 %v1597, %v1598
    %v1600 = vrcp.pop %v1592
    %v1601 = vmul.f32 %v1583, %v1600
    %v1602 = vrcp.pop %v1599
    %v1603 = vmul.f32 %v1585, %v1602
    %v1605 = vsel %vm577, %v1601, 0
    %v1608 = vsel %vm577, %v1603, 0
    %1610 = vmatprep.subr.mxu0 0.0
    %1611 = vmatpush1.msra.mxu0 0.0
    %1612 = vmatprep.subr.mxu0 0.0
    %1613 = vmatpush1.msra.mxu0 0.0
    %1614 = vmatprep.subr.mxu0 0.0
    %1615 = vmatpush1.msra.mxu0 0.0
    %1616 = vmatprep.subr.mxu0 0.0
    %1617 = vmatpush1.msra.mxu0 0.0
    %1618 = vmatprep.subr.mxu0 0.0
    %1619 = vmatpush1.msra.mxu0 0.0
    %1620 = vmatprep.subr.mxu0 0.0
    %1621 = vmatpush1.msra.mxu0 0.0
    %1622 = vmatprep.subr.mxu0 0.0
    %1623 = vmatpush1.msra.mxu0 0.0
    %1624 = vmatprep.subr.mxu0 0.0
    %1625 = vmatpush1.msra.mxu0 0.0
    %1626 = vmatprep.subr.mxu0 0.0
    %1627 = vmatpush1.msra.mxu0 0.0
    %1628 = vmatprep.subr.mxu0 0.0
    %1629 = vmatpush1.msra.mxu0 0.0
    %1630 = vmatprep.subr.mxu0 0.0
    %1631 = vmatpush1.msra.mxu0 0.0
    %1632 = vmatprep.subr.mxu0 0.0
    %1633 = vmatpush1.msra.mxu0 0.0
    %1634 = vmatprep.subr.mxu0 0.0
    %1635 = vmatpush1.msra.mxu0 0.0
    %1636 = vmatprep.subr.mxu0 0.0
    %1637 = vmatpush1.msra.mxu0 0.0
    %1638 = vmatprep.subr.mxu0 0.0
    %1639 = vmatpush1.msra.mxu0 0.0
    %1640 = vmatprep.subr.mxu0 %v95
    %1641 = vmatpush1.msra.mxu0 %v94
    %1642 = vmatprep.subr.mxu0 0.0
    %1643 = vmatpush2.msra.mxu0 0.0
    %1644 = vmatprep.subr.mxu0 0.0
    %1645 = vmatpush2.msra.mxu0 0.0
    %1646 = vmatprep.subr.mxu0 0.0
    %1647 = vmatpush2.msra.mxu0 0.0
    %1648 = vmatprep.subr.mxu0 0.0
    %1649 = vmatpush2.msra.mxu0 0.0
    %1650 = vmatprep.subr.mxu0 0.0
    %1651 = vmatpush2.msra.mxu0 0.0
    %1652 = vmatprep.subr.mxu0 0.0
    %1653 = vmatpush2.msra.mxu0 0.0
    %1654 = vmatprep.subr.mxu0 0.0
    %1655 = vmatpush2.msra.mxu0 0.0
    %1656 = vmatprep.subr.mxu0 0.0
    %1657 = vmatpush2.msra.mxu0 0.0
    %1658 = vmatprep.subr.mxu0 0.0
    %1659 = vmatpush2.msra.mxu0 0.0
    %1660 = vmatprep.subr.mxu0 0.0
    %1661 = vmatpush2.msra.mxu0 0.0
    %1662 = vmatprep.subr.mxu0 0.0
    %1663 = vmatpush2.msra.mxu0 0.0
    %1664 = vmatprep.subr.mxu0 0.0
    %1665 = vmatpush2.msra.mxu0 0.0
    %1666 = vmatprep.subr.mxu0 0.0
    %1667 = vmatpush2.msra.mxu0 0.0
    %1668 = vmatprep.subr.mxu0 0.0
    %1669 = vmatpush2.msra.mxu0 0.0
    %1670 = vmatprep.subr.mxu0 0.0
    %1671 = vmatpush2.msra.mxu0 0.0
    %1672 = vmatprep.subr.mxu0 0.0
    %1673 = vmatpush2.msra.mxu0 0.0
    %1674 = vmatprep.mubr.f32.mxu0 0.0
    %1675 = vmatmul.mubr.f32.gmra.mxu0 %v1605
    %v1676 = vpop.f32.mrf.mxu0
    %v1677 = vadd.f32 0.0, %v1676
    %v1678 = vpop.f32.mrf.mxu0
    %v1679 = vadd.f32 0.0, %v1678
    %1680 = vmatprep.mubr.f32.mxu0 0.0
    %1681 = vmatmul.mubr.f32.gmra.mxu0 %v1608
    %v1682 = vpop.f32.mrf.mxu0
    %v1683 = vadd.f32 0.0, %v1682
    %v1684 = vpop.f32.mrf.mxu0
    %v1685 = vadd.f32 0.0, %v1684
    %1686 = vdwg.mxu0
    %v1687 = vmul.f32 %v1677, %v1355
    %v1688 = vmul.f32 %v1679, %v1357
    %v1689 = vmul.f32 %v1683, %v1361
    %v1690 = vmul.f32 %v1685, %v1363
    %v1691 = vrot.slane %v1687, 4
    %v1692 = vadd.f32 %v1687, %v1691
    %v1693 = vrot.slane %v1692, 2
    %v1694 = vadd.f32 %v1692, %v1693
    %v1695 = vrot.slane %v1694, 1
    %v1696 = vadd.f32 %v1694, %v1695
    %v1697 = vrot.slane %v1688, 4
    %v1698 = vadd.f32 %v1688, %v1697
    %v1699 = vrot.slane %v1698, 2
    %v1700 = vadd.f32 %v1698, %v1699
    %v1701 = vrot.slane %v1700, 1
    %v1702 = vadd.f32 %v1700, %v1701
    %v1703 = vrot.slane %v1689, 4
    %v1704 = vadd.f32 %v1689, %v1703
    %v1705 = vrot.slane %v1704, 2
    %v1706 = vadd.f32 %v1704, %v1705
    %v1707 = vrot.slane %v1706, 1
    %v1708 = vadd.f32 %v1706, %v1707
    %v1709 = vrot.slane %v1690, 4
    %v1710 = vadd.f32 %v1690, %v1709
    %v1711 = vrot.slane %v1710, 2
    %v1712 = vadd.f32 %v1710, %v1711
    %v1713 = vrot.slane %v1712, 1
    %v1714 = vadd.f32 %v1712, %v1713
    %v1716 = vlaneseq
    %v1717 = vshrl.u32 %v1716, 7
    %v1718 = vsub.s32 0, %v1717
    %v1719 = vrot.slane %v1140, %v1718
    %v1725 = vsel %vm376, %v1708, %v1696
    %v1726 = vsel %vm376, %v1714, %v1702
    %1729 = vmatprep.subr.mxu0 0.0
    %1730 = vmatpush1.msra.mxu0 %v1122
    %1731 = vmatprep.subr.mxu0 0.0
    %1732 = vmatpush1.msra.mxu0 %v1121
    %1733 = vmatprep.subr.mxu0 0.0
    %1734 = vmatpush1.msra.mxu0 %v1120
    %1735 = vmatprep.subr.mxu0 0.0
    %1736 = vmatpush1.msra.mxu0 %v1119
    %1737 = vmatprep.subr.mxu0 0.0
    %1738 = vmatpush1.msra.mxu0 %v1118
    %1739 = vmatprep.subr.mxu0 0.0
    %1740 = vmatpush1.msra.mxu0 %v1117
    %1741 = vmatprep.subr.mxu0 0.0
    %1742 = vmatpush1.msra.mxu0 %v1116
    %1743 = vmatprep.subr.mxu0 0.0
    %1744 = vmatpush1.msra.mxu0 %v1115
    %1745 = vmatprep.subr.mxu0 0.0
    %1746 = vmatpush1.msra.mxu0 %v1114
    %1747 = vmatprep.subr.mxu0 0.0
    %1748 = vmatpush1.msra.mxu0 %v1113
    %1749 = vmatprep.subr.mxu0 0.0
    %1750 = vmatpush1.msra.mxu0 %v1112
    %1751 = vmatprep.subr.mxu0 0.0
    %1752 = vmatpush1.msra.mxu0 %v1111
    %1753 = vmatprep.subr.mxu0 0.0
    %1754 = vmatpush1.msra.mxu0 %v1110
    %1755 = vmatprep.subr.mxu0 0.0
    %1756 = vmatpush1.msra.mxu0 %v1109
    %1757 = vmatprep.subr.mxu0 0.0
    %1758 = vmatpush1.msra.mxu0 %v1108
    %1759 = vmatprep.subr.mxu0 0.0
    %1760 = vmatpush1.msra.mxu0 %v1107
    %1761 = vmatprep.subr.mxu0 0.0
    %1762 = vmatpush2.msra.mxu0 %v1138
    %1763 = vmatprep.subr.mxu0 0.0
    %1764 = vmatpush2.msra.mxu0 %v1137
    %1765 = vmatprep.subr.mxu0 0.0
    %1766 = vmatpush2.msra.mxu0 %v1136
    %1767 = vmatprep.subr.mxu0 0.0
    %1768 = vmatpush2.msra.mxu0 %v1135
    %1769 = vmatprep.subr.mxu0 0.0
    %1770 = vmatpush2.msra.mxu0 %v1134
    %1771 = vmatprep.subr.mxu0 0.0
    %1772 = vmatpush2.msra.mxu0 %v1133
    %1773 = vmatprep.subr.mxu0 0.0
    %1774 = vmatpush2.msra.mxu0 %v1132
    %1775 = vmatprep.subr.mxu0 0.0
    %1776 = vmatpush2.msra.mxu0 %v1131
    %1777 = vmatprep.subr.mxu0 0.0
    %1778 = vmatpush2.msra.mxu0 %v1130
    %1779 = vmatprep.subr.mxu0 0.0
    %1780 = vmatpush2.msra.mxu0 %v1129
    %1781 = vmatprep.subr.mxu0 0.0
    %1782 = vmatpush2.msra.mxu0 %v1128
    %1783 = vmatprep.subr.mxu0 0.0
    %1784 = vmatpush2.msra.mxu0 %v1127
    %1785 = vmatprep.subr.mxu0 0.0
    %1786 = vmatpush2.msra.mxu0 %v1126
    %1787 = vmatprep.subr.mxu0 0.0
    %1788 = vmatpush2.msra.mxu0 %v1125
    %1789 = vmatprep.subr.mxu0 0.0
    %1790 = vmatpush2.msra.mxu0 %v1124
    %1791 = vmatprep.subr.mxu0 0.0
    %1792 = vmatpush2.msra.mxu0 %v1123
    %1793 = vmatprep.mubr.f32.mxu0 %v1726
    %1794 = vmatmul.mubr.f32.gmra.mxu0 %v1725
    %v1795 = vpop.f32.mrf.mxu0
    %v1796 = vadd.f32 %v1719, %v1795
    %v1797 = vpop.f32.mrf.mxu0
    %1798 = vdwg.mxu0
    %v1801 = vunpack.c.l.s4 1966171168
    %v1802 = vunpack.c.0.s8 %v1801
    %v1803 = vlaneseq
    %v1804 = vshrl.u32 %v1803, 7
    %v1805 = vsub.s32 %v1802, %v1804
    %v1806 = vrot.slane %v1796, %v1805
    %v1807 = vcombine.high %v1806, %v1806
    %v1809 = vunpack.c.l.s4 1966171168
    %v1810 = vunpack.c.0.s8 %v1809
    %v1811 = vlaneseq
    %v1812 = vshrl.u32 %v1811, 7
    %v1813 = vsub.s32 %v1810, %v1812
    %v1814 = vrot.slane %v1806, %v1813
    %v1816 = vunpack.c.l.s4 1966171168
    %v1817 = vunpack.c.0.s8 %v1816
    %v1818 = vlaneseq
    %v1819 = vshrl.u32 %v1818, 7
    %v1820 = vsub.s32 %v1817, %v1819
    %v1821 = vrot.slane %v1807, %v1820
    %v1822 = vlaneseq
    %v1823 = vshrl.u32 %v1822, 7
    %v1824 = vsub.s32 0, %v1823
    %v1825 = vrot.slane %v1814, %v1824
    %v1826 = vlaneseq
    %v1827 = vshrl.u32 %v1826, 7
    %v1828 = vsub.s32 0, %v1827
    %v1829 = vrot.slane %v1821, %v1828
    %v1832 = vadd.f32 %v1073, %v1825
    %v1833 = vadd.f32 %v1074, %v1829
    %v1834 = vsel %vm171, %v1832, 0.0
    %1835 = vadd.xlane.f32.xlu0 %v1834
    %v1836 = vpop.xlane.xlu0 %1835
    %v1837 = vsel %vm171, %v1833, 0.0
    %1838 = vadd.xlane.f32.xlu0 %v1837
    %v1839 = vpop.xlane.xlu0 %1838
    %v1840 = vmul.f32 %v1836, %v178
    %v1841 = vmul.f32 %v1839, %v178
    %v1842 = vsub.f32 %v1832, %v1840
    %v1843 = vsub.f32 %v1833, %v1841
    %v1844 = vmul.f32 %v1842, %v1842
    %v1845 = vmul.f32 %v1843, %v1843
    %v1846 = vsel %vm171, %v1844, 0.0
    %1847 = vadd.xlane.f32.xlu0 %v1846
    %v1848 = vpop.xlane.xlu0 %1847
    %v1849 = vsel %vm171, %v1845, 0.0
    %1850 = vadd.xlane.f32.xlu0 %v1849
    %v1851 = vpop.xlane.xlu0 %1850
    %v1852 = vmul.f32 %v1848, %v178
    %v1853 = vmul.f32 %v1851, %v178
    %v1854 = vadd.f32 %v1852, 1e-06
    %v1855 = vadd.f32 %v1853, 1e-06
    %v1856 = vrsqrt.pop %v1854
    %v1857 = vrsqrt.pop %v1855
    %v1858 = vmul.f32 %v1842, %v1856
    %v1859 = vmul.f32 %v1843, %v1857
    %v1861 = vlaneseq
    %v1862 = vshrl.u32 %v1861, 7
    %v1863 = vsub.s32 0, %v1862
    %v1864 = vrot.slane %v1142, %v1863
    %v1866 = vmul.f32 %v1858, %v1864
    %v1867 = vmul.f32 %v1859, %v1864
    %v1869 = vlaneseq
    %v1870 = vshrl.u32 %v1869, 7
    %v1871 = vsub.s32 0, %v1870
    %v1872 = vrot.slane %v1144, %v1871
    %v1874 = vadd.f32 %v1866, %v1872
    %v1875 = vadd.f32 %v1867, %v1872
    %v1877 = vlaneseq
    %v1878 = vshrl.u32 %v1877, 7
    %v1879 = vsub.s32 0, %v1878
    %v1880 = vrot.slane %v1151, %v1879
    %v1883 = vsel %vm171, %v1874, 0
    %v1886 = vsel %vm171, %v1875, 0
    %1888 = vmatprep.subr.mxu0 0.0
    %1889 = vmatpush1.msra.mxu0 0.0
    %1890 = vmatprep.subr.mxu0 0.0
    %1891 = vmatpush1.msra.mxu0 0.0
    %1892 = vmatprep.subr.mxu0 0.0
    %1893 = vmatpush1.msra.mxu0 0.0
    %1894 = vmatprep.subr.mxu0 0.0
    %1895 = vmatpush1.msra.mxu0 0.0
    %1896 = vmatprep.subr.mxu0 0.0
    %1897 = vmatpush1.msra.mxu0 0.0
    %1898 = vmatprep.subr.mxu0 0.0
    %1899 = vmatpush1.msra.mxu0 0.0
    %1900 = vmatprep.subr.mxu0 0.0
    %1901 = vmatpush1.msra.mxu0 0.0
    %1902 = vmatprep.subr.mxu0 0.0
    %1903 = vmatpush1.msra.mxu0 0.0
    %1904 = vmatprep.subr.mxu0 0.0
    %1905 = vmatpush1.msra.mxu0 0.0
    %1906 = vmatprep.subr.mxu0 0.0
    %1907 = vmatpush1.msra.mxu0 0.0
    %1908 = vmatprep.subr.mxu0 0.0
    %1909 = vmatpush1.msra.mxu0 0.0
    %1910 = vmatprep.subr.mxu0 0.0
    %1911 = vmatpush1.msra.mxu0 0.0
    %1912 = vmatprep.subr.mxu0 0.0
    %1913 = vmatpush1.msra.mxu0 %v1149
    %1914 = vmatprep.subr.mxu0 0.0
    %1915 = vmatpush1.msra.mxu0 %v1148
    %1916 = vmatprep.subr.mxu0 0.0
    %1917 = vmatpush1.msra.mxu0 %v1147
    %1918 = vmatprep.subr.mxu0 0.0
    %1919 = vmatpush1.msra.mxu0 %v1146
    %1920 = vmatprep.subr.mxu0 0.0
    %1921 = vmatpush2.msra.mxu0 0.0
    %1922 = vmatprep.subr.mxu0 0.0
    %1923 = vmatpush2.msra.mxu0 0.0
    %1924 = vmatprep.subr.mxu0 0.0
    %1925 = vmatpush2.msra.mxu0 0.0
    %1926 = vmatprep.subr.mxu0 0.0
    %1927 = vmatpush2.msra.mxu0 0.0
    %1928 = vmatprep.subr.mxu0 0.0
    %1929 = vmatpush2.msra.mxu0 0.0
    %1930 = vmatprep.subr.mxu0 0.0
    %1931 = vmatpush2.msra.mxu0 0.0
    %1932 = vmatprep.subr.mxu0 0.0
    %1933 = vmatpush2.msra.mxu0 0.0
    %1934 = vmatprep.subr.mxu0 0.0
    %1935 = vmatpush2.msra.mxu0 0.0
    %1936 = vmatprep.subr.mxu0 0.0
    %1937 = vmatpush2.msra.mxu0 0.0
    %1938 = vmatprep.subr.mxu0 0.0
    %1939 = vmatpush2.msra.mxu0 0.0
    %1940 = vmatprep.subr.mxu0 0.0
    %1941 = vmatpush2.msra.mxu0 0.0
    %1942 = vmatprep.subr.mxu0 0.0
    %1943 = vmatpush2.msra.mxu0 0.0
    %1944 = vmatprep.subr.mxu0 0.0
    %1945 = vmatpush2.msra.mxu0 0.0
    %1946 = vmatprep.subr.mxu0 0.0
    %1947 = vmatpush2.msra.mxu0 0.0
    %1948 = vmatprep.subr.mxu0 0.0
    %1949 = vmatpush2.msra.mxu0 0.0
    %1950 = vmatprep.subr.mxu0 0.0
    %1951 = vmatpush2.msra.mxu0 0.0
    %1952 = vmatprep.mubr.f32.mxu0 0.0
    %1953 = vmatmul.mubr.f32.gmra.mxu0 %v1883
    %v1954 = vpop.f32.mrf.mxu0
    %v1955 = vadd.f32 %v1880, %v1954
    %v1956 = vpop.f32.mrf.mxu0
    %1957 = vmatprep.mubr.f32.mxu0 0.0
    %1958 = vmatmul.mubr.f32.gmra.mxu0 %v1886
    %v1959 = vpop.f32.mrf.mxu0
    %v1960 = vadd.f32 %v1880, %v1959
    %v1961 = vpop.f32.mrf.mxu0
    %1962 = vdwg.mxu0
    %v1963 = vmul.f32 %v1955, 0.5
    %v1964 = vmul.f32 %v1960, 0.5
    %v1965 = vmul.f32 %v1955, 0.70710677
    %v1966 = vmul.f32 %v1960, 0.70710677
    %v1967 = verf.f32.pop %v1965
    %v1968 = verf.f32.pop %v1966
    %v1969 = vadd.f32 %v1967, 1.0
    %v1970 = vadd.f32 %v1968, 1.0
    %v1971 = vmul.f32 %v1963, %v1969
    %v1972 = vmul.f32 %v1964, %v1970
    %v1974 = vlaneseq
    %v1975 = vshrl.u32 %v1974, 7
    %v1976 = vsub.s32 0, %v1975
    %v1977 = vrot.slane %v1162, %v1976
    %v1980 = vsel %vm991, %v1971, 0
    %v1983 = vsel %vm991, %v1972, 0
    %1985 = vmatprep.subr.mxu0 0.0
    %1986 = vmatpush1.msra.mxu0 0.0
    %1987 = vmatprep.subr.mxu0 0.0
    %1988 = vmatpush1.msra.mxu0 0.0
    %1989 = vmatprep.subr.mxu0 0.0
    %1990 = vmatpush1.msra.mxu0 0.0
    %1991 = vmatprep.subr.mxu0 0.0
    %1992 = vmatpush1.msra.mxu0 0.0
    %1993 = vmatprep.subr.mxu0 0.0
    %1994 = vmatpush1.msra.mxu0 0.0
    %1995 = vmatprep.subr.mxu0 0.0
    %1996 = vmatpush1.msra.mxu0 0.0
    %1997 = vmatprep.subr.mxu0 0.0
    %1998 = vmatpush1.msra.mxu0 0.0
    %1999 = vmatprep.subr.mxu0 0.0
    %2000 = vmatpush1.msra.mxu0 0.0
    %2001 = vmatprep.subr.mxu0 0.0
    %2002 = vmatpush1.msra.mxu0 %v1160
    %2003 = vmatprep.subr.mxu0 0.0
    %2004 = vmatpush1.msra.mxu0 %v1159
    %2005 = vmatprep.subr.mxu0 0.0
    %2006 = vmatpush1.msra.mxu0 %v1158
    %2007 = vmatprep.subr.mxu0 0.0
    %2008 = vmatpush1.msra.mxu0 %v1157
    %2009 = vmatprep.subr.mxu0 0.0
    %2010 = vmatpush1.msra.mxu0 %v1156
    %2011 = vmatprep.subr.mxu0 0.0
    %2012 = vmatpush1.msra.mxu0 %v1155
    %2013 = vmatprep.subr.mxu0 0.0
    %2014 = vmatpush1.msra.mxu0 %v1154
    %2015 = vmatprep.subr.mxu0 0.0
    %2016 = vmatpush1.msra.mxu0 %v1153
    %2017 = vmatprep.subr.mxu0 0.0
    %2018 = vmatpush2.msra.mxu0 0.0
    %2019 = vmatprep.subr.mxu0 0.0
    %2020 = vmatpush2.msra.mxu0 0.0
    %2021 = vmatprep.subr.mxu0 0.0
    %2022 = vmatpush2.msra.mxu0 0.0
    %2023 = vmatprep.subr.mxu0 0.0
    %2024 = vmatpush2.msra.mxu0 0.0
    %2025 = vmatprep.subr.mxu0 0.0
    %2026 = vmatpush2.msra.mxu0 0.0
    %2027 = vmatprep.subr.mxu0 0.0
    %2028 = vmatpush2.msra.mxu0 0.0
    %2029 = vmatprep.subr.mxu0 0.0
    %2030 = vmatpush2.msra.mxu0 0.0
    %2031 = vmatprep.subr.mxu0 0.0
    %2032 = vmatpush2.msra.mxu0 0.0
    %2033 = vmatprep.subr.mxu0 0.0
    %2034 = vmatpush2.msra.mxu0 0.0
    %2035 = vmatprep.subr.mxu0 0.0
    %2036 = vmatpush2.msra.mxu0 0.0
    %2037 = vmatprep.subr.mxu0 0.0
    %2038 = vmatpush2.msra.mxu0 0.0
    %2039 = vmatprep.subr.mxu0 0.0
    %2040 = vmatpush2.msra.mxu0 0.0
    %2041 = vmatprep.subr.mxu0 0.0
    %2042 = vmatpush2.msra.mxu0 0.0
    %2043 = vmatprep.subr.mxu0 0.0
    %2044 = vmatpush2.msra.mxu0 0.0
    %2045 = vmatprep.subr.mxu0 0.0
    %2046 = vmatpush2.msra.mxu0 0.0
    %2047 = vmatprep.subr.mxu0 0.0
    %2048 = vmatpush2.msra.mxu0 0.0
    %2049 = vmatprep.mubr.f32.mxu0 0.0
    %2050 = vmatmul.mubr.f32.gmra.mxu0 %v1980
    %v2051 = vpop.f32.mrf.mxu0
    %v2052 = vadd.f32 %v1977, %v2051
    %v2053 = vpop.f32.mrf.mxu0
    %2054 = vmatprep.mubr.f32.mxu0 0.0
    %2055 = vmatmul.mubr.f32.gmra.mxu0 %v1983
    %v2056 = vpop.f32.mrf.mxu0
    %v2057 = vadd.f32 %v1977, %v2056
    %v2058 = vpop.f32.mrf.mxu0
    %2059 = vdwg.mxu0
    %v2060 = vadd.f32 %v1832, %v2052
    %v2061 = vadd.f32 %v1833, %v2057
    %v2062 = vld [vmem:[%s16] sm:$0x1]
    %v2063 = vld [vmem:[%s17] sm:$0x1]
    %v2066 = vrot.slane %v2061, 7
    %v2067 = vsel %vm376, %v2066, %v2060
    %vm2069 = vcmask 254976
    %v2070 = vsel %vm2069, %v2067, 0.0
    %2071 = vadd.xlane.f32.xlu0 %v2070
    %v2072 = vpop.xlane.xlu0 %2071
    %v2073 = vmul.f32 %v2072, %v178
    %v2075 = vrot.slane %v2073, 1
    %v2078 = vsub.f32 %v2060, %v2073
    %v2079 = vsub.f32 %v2061, %v2075
    %v2080 = vmul.f32 %v2078, %v2078
    %v2081 = vmul.f32 %v2079, %v2079
    %v2084 = vrot.slane %v2081, 7
    %v2085 = vsel %vm376, %v2084, %v2080
    %v2087 = vsel %vm2069, %v2085, 0.0
    %2088 = vadd.xlane.f32.xlu0 %v2087
    %v2089 = vpop.xlane.xlu0 %2088
    %v2090 = vmul.f32 %v2089, %v178
    %v2091 = vadd.f32 %v2090, 1e-06
    %v2092 = vrsqrt.pop %v2091
    %v2094 = vrot.slane %v2092, 1
    %v2097 = vmul.f32 %v2078, %v2092
    %v2098 = vmul.f32 %v2079, %v2094
    %v2100 = vlaneseq
    %v2101 = vshrl.u32 %v2100, 7
    %v2102 = vsub.s32 0, %v2101
    %v2103 = vrot.slane %v2062, %v2102
    %v2105 = vmul.f32 %v2097, %v2103
    %v2106 = vmul.f32 %v2098, %v2103
    %v2108 = vlaneseq
    %v2109 = vshrl.u32 %v2108, 7
    %v2110 = vsub.s32 0, %v2109
    %v2111 = vrot.slane %v2063, %v2110
    %v2113 = vadd.f32 %v2105, %v2111
    %v2114 = vadd.f32 %v2106, %v2111
    %v2117 = vrot.slane %v2114, 7
    %v2118 = vsel %vm376, %v2117, %v2113
    %2120 = vst.msk [vmem:[#allocation2] sm:$0x3] %vm2069, %v2118
    // Predicated region
    $region74: #{tpu_custom_call.1} parent=1 // pred_check
      _
    $region75: #{tpu_custom_call.1} parent=1 // pred_check_branch
      %2122 = sbr.rel (0) target = $region77
    $region76: #{tpu_custom_call.1} parent=1 // pred_region
      %s2124 = ssub.s32 32, 32
      %2125 = vsyncadd [#allocation3], %s2124
      %s2127 = sshll.u32 [#allocation2], 4
      %s2128 = int_to_ptr.vmem [resolvable:$true] %s2127
      %2130 = dma.vmem_to_hbm [thread:$0]  %s2128, 32, %s18, [#allocation3]
    $region77: #{tpu_custom_call.1} parent=1 // pred_fallthru
      _
    // Predicated region
    $region78: #{tpu_custom_call.1} parent=1 // pred_check
      _
    $region79: #{tpu_custom_call.1} parent=1 // pred_check_branch
      %2132 = sbr.rel (0) target = $region81
    $region80: #{tpu_custom_call.1} parent=1 // pred_region
      %2133 = dma.done [#allocation3], 32
    $region81: #{tpu_custom_call.1} parent=1 // pred_fallthru
      _
    %2134 = vsyncpa [#allocation3], 1

</llo_original>
